<compile_context>
chip_gen: v5e
topology: v5e:2x2
jax: 0.10.0
libtpu: 0.0.40
codegen_flags: <defaults>
</compile_context>

<pallas_src>
import jax
import jax.numpy as jnp
from jax import lax
from jax.experimental import pallas as pl
from jax.experimental.pallas import tpu as pltpu


def alstm_kernel(x_ref,                         # [T*Bp, D_in]  time-major, batch-padded
                 w_in_ref, b_in_ref,            # [D_in, H], [1, H]
                 w_ih0_ref, w_hh0_ref, b0_ref,  # [H, 4H], [H, 4H], [1, 4H]
                 w1_ref, b1_ref,                # [2H, 4H] (ih1|hh1 fused), [1, 4H]
                 wa1_ref, ba1_ref, wa2r_ref,    # [H, H/2], [1, H/2], [1, H/2]
                 wo_ref, bo_ref,                # [2H, C] (h|att fused), [1, C]
                 out_ref,                       # [Bp, C]
                 g0_scr):                       # [T*Bp, 4H] hoisted layer-0 input gates
    TB, G4 = g0_scr.shape                       # G4 = 4*H
    Bp = out_ref.shape[0]
    T = TB // Bp
    H = w_hh0_ref.shape[0]
    H2 = wa1_ref.shape[1]
    f32 = jnp.float32

    # ---------------- hoisted, MXU-dense pre-loop GEMMs ----------------
    # TODO(synk): at production T*Bp, chunk this over row tiles (emit_pipeline)
    # so the full-size `z` temporary never exists in VMEM, and store g0_scr in
    # bf16 to halve the trajectory footprint (re-validate tolerance).
    z = jnp.tanh(jnp.dot(x_ref[...], w_in_ref[...],
                         preferred_element_type=f32) + b_in_ref[...])        # [TB, H]
    g0_scr[...] = jnp.dot(z, w_ih0_ref[...],
                          preferred_element_type=f32) + b0_ref[...]          # [TB, 4H]

    # Hoist recurrent weights / bias broadcasts out of the loop (JAX does not
    # CSE broadcast_in_dim, so do it once here).
    w_hh0 = w_hh0_ref[...]
    w1 = w1_ref[...]                                           # [2H, 4H]
    b1b = jnp.broadcast_to(b1_ref[...], (Bp, G4))
    wa1 = wa1_ref[...]                                         # [H, H2]
    ba1b = jnp.broadcast_to(ba1_ref[...], (Bp, H2))
    wa2r = wa2r_ref[...]                                       # [1, H2]

    def sigmoid1(v):
        # Exactly sigmoid, but a single EUP tanh push instead of exp+reciprocal.
        return 0.5 * jnp.tanh(0.5 * v) + 0.5

    def lstm_gates(g, c_prev):
        # PyTorch gate order: i, f, g, o.
        # TODO(synk): for production hidden sizes choose H a multiple of 128 (or
        # lay weights out as [*, 4, Hpad]) so these lane slices are tile-aligned.
        i = sigmoid1(g[:, 0 * H:1 * H])
        f = sigmoid1(g[:, 1 * H:2 * H])
        gg = jnp.tanh(g[:, 2 * H:3 * H])
        o = sigmoid1(g[:, 3 * H:4 * H])
        c_new = f * c_prev + i * gg
        h_new = o * jnp.tanh(c_new)
        return h_new, c_new

    # -------- serial recurrence + fused online-softmax attention --------
    # LSTM state and softmax running stats live in vreg carries (no per-step
    # VMEM state traffic).  The attention dot/exp work per step does not feed
    # the recurrence, so it is free filler under the recurrent MXU latency.
    def step(t, carry):
        h0, c0, h1, c1, m, l, acc = carry
        row = pl.multiple_of(t * Bp, Bp)                       # sublane-aligned slice
        # layer 0
        g0 = g0_scr[pl.ds(row, Bp), :] + jnp.dot(h0, w_hh0,
                                                 preferred_element_type=f32)
        h0, c0 = lstm_gates(g0, c0)
        # layer 1: single fused K=2H matmul (ih and hh in one MXU sequence)
        g1 = jnp.dot(jnp.concatenate([h0, h1], axis=1), w1,
                     preferred_element_type=f32) + b1b
        h1, c1 = lstm_gates(g1, c1)
        # attention score for step t + flash-style online softmax update
        a1 = jnp.tanh(jnp.dot(h1, wa1, preferred_element_type=f32) + ba1b)  # [Bp, H2]
        s = jnp.sum(a1 * wa2r, axis=-1, keepdims=True)                      # [Bp, 1]
        m_new = jnp.maximum(m, s)
        scale = jnp.exp(m - m_new)
        p = jnp.exp(s - m_new)
        l = l * scale + p
        acc = acc * scale + p * h1
        return (h0, c0, h1, c1, m_new, l, acc)

    zero = jnp.zeros((Bp, H), f32)
    m0 = jnp.full((Bp, 1), -jnp.inf, f32)
    l0 = jnp.zeros((Bp, 1), f32)
    acc0 = jnp.zeros((Bp, H), f32)
    unroll = T if T <= 8 else 4
    _, _, h_last, _, _, l, acc = lax.fori_loop(
        0, T, step, (zero, zero, zero, zero, m0, l0, acc0), unroll=unroll)

    # ---------------- finalize softmax + fused output GEMM ----------------
    inv_l = pl.reciprocal(l, approx=True)       # EUP slot
    inv_l = inv_l * (2.0 - l * inv_l)           # one Newton step -> f32-exact
    out_att = acc * inv_l                       # [Bp, H]

    ho = jnp.concatenate([h_last, out_att], axis=1)            # [Bp, 2H]
    out = jnp.dot(ho, wo_ref[...], preferred_element_type=f32) + bo_ref[...]
    out_ref[...] = out.astype(out_ref.dtype)


def init_params(key, d_feat, hidden, n_instruments, emb_dim, n_classes):
    D = d_feat + emb_dim
    H = hidden
    H2 = H // 2
    ks = jax.random.split(key, 20)

    def u(k, shape, fan_in):
        s = 1.0 / jnp.sqrt(jnp.float32(fan_in))
        return jax.random.uniform(k, shape, jnp.float32, -s, s)

    p = {}
    p["embedding"] = jax.random.normal(ks[0], (n_instruments, emb_dim), jnp.float32)
    # fc_in
    p["w_in"] = u(ks[1], (D, H), D)
    p["b_in"] = u(ks[2], (1, H), D)
    # LSTM layer 0 (input H -> hidden H), biases b_ih + b_hh pre-summed
    p["w_ih0"] = u(ks[3], (H, 4 * H), H)
    p["w_hh0"] = u(ks[4], (H, 4 * H), H)
    p["b0"] = u(ks[5], (1, 4 * H), H) + u(ks[6], (1, 4 * H), H)
    # LSTM layer 1
    p["w_ih1"] = u(ks[7], (H, 4 * H), H)
    p["w_hh1"] = u(ks[8], (H, 4 * H), H)
    p["b1"] = u(ks[9], (1, 4 * H), H) + u(ks[10], (1, 4 * H), H)
    # attention net
    p["wa1"] = u(ks[11], (H, H2), H)
    p["ba1"] = u(ks[12], (1, H2), H)
    p["wa2"] = u(ks[13], (H2, 1), H2)       # bias=False
    # fc_out (input 2H -> C), split into [h_last | out_att] halves
    p["wo_h"] = u(ks[14], (H, n_classes), 2 * H)
    p["wo_a"] = u(ks[15], (H, n_classes), 2 * H)
    p["bo"] = u(ks[16], (1, n_classes), 2 * H)
    return p


def alstm_forward(x_continuous, x_instrument, params):
    # --- glue (plain JAX): embedding lookup + concat + time-major + batch pad ---
    emb = params["embedding"][x_instrument]                                  # [B, T, E]
    x = jnp.concatenate([x_continuous.astype(jnp.float32), emb], axis=2)     # [B, T, D]
    B, T, D = x.shape
    H = params["w_hh0"].shape[0]
    C = params["wo_h"].shape[1]

    # Pad batch to a sublane multiple (>=8) so per-step slices are aligned.
    Bp = max(8, -(-B // 8) * 8)
    x_tm = jnp.transpose(x, (1, 0, 2))                                       # [T, B, D]
    x_tm = jnp.pad(x_tm, ((0, 0), (0, Bp - B), (0, 0)))                      # [T, Bp, D]
    x2d = x_tm.reshape(T * Bp, D)                                            # time-major rows

    # Host-side weight fusions (match PyTorch layouts exactly).
    w1 = jnp.concatenate([params["w_ih1"], params["w_hh1"]], axis=0)         # [2H, 4H]
    wo = jnp.concatenate([params["wo_h"], params["wo_a"]], axis=0)           # [2H, C]
    wa2_row = jnp.transpose(params["wa2"])                                   # [1, H2]

    vmem = pl.BlockSpec(memory_space=pltpu.MemorySpace.VMEM)
    inputs = (x2d,
              params["w_in"], params["b_in"],
              params["w_ih0"], params["w_hh0"], params["b0"],
              w1, params["b1"],
              params["wa1"], params["ba1"], wa2_row,
              wo, params["bo"])

    out = pl.pallas_call(
        alstm_kernel,
        out_shape=jax.ShapeDtypeStruct((Bp, C), jnp.float32),
        in_specs=[vmem] * len(inputs),
        out_specs=vmem,
        scratch_shapes=[
            pltpu.VMEM((T * Bp, 4 * H), jnp.float32),   # hoisted layer-0 input gates
        ],
        compiler_params=pltpu.CompilerParams(
            vmem_limit_bytes=32 * 1024 * 1024,
        ),
    )(*inputs)
    # TODO(synk): for large B add a batch-tile grid axis with
    # dimension_semantics=("parallel",) to shard across v7x's two TensorCores;
    # for large T add a time-chunk ("arbitrary") axis streaming x2d/g0 per chunk
    # with (h,c,m,l,acc) carried in persistent VMEM scratch.
    return out[:B]


def alstm_reference(x_continuous, x_instrument, params):
    """Pure-JAX reference matching the PyTorch forward semantics."""
    emb = params["embedding"][x_instrument]
    x = jnp.concatenate([x_continuous.astype(jnp.float32), emb], axis=2)  # [B, T, D]
    z = jnp.tanh(x @ params["w_in"] + params["b_in"])                     # [B, T, H]
    B, T, H = z.shape

    def cell(x_t, h, c, w_ih, w_hh, b):
        g = x_t @ w_ih + h @ w_hh + b
        i = jax.nn.sigmoid(g[:, :H])
        f = jax.nn.sigmoid(g[:, H:2 * H])
        gg = jnp.tanh(g[:, 2 * H:3 * H])
        o = jax.nn.sigmoid(g[:, 3 * H:])
        c_new = f * c + i * gg
        return o * jnp.tanh(c_new), c_new

    def step(carry, x_t):
        h0, c0, h1, c1 = carry
        h0, c0 = cell(x_t, h0, c0, params["w_ih0"], params["w_hh0"], params["b0"])
        h1, c1 = cell(h0, h1, c1, params["w_ih1"], params["w_hh1"], params["b1"])
        return (h0, c0, h1, c1), h1

    zeros = jnp.zeros((B, H), jnp.float32)
    _, rnn = lax.scan(step, (zeros, zeros, zeros, zeros),
                      jnp.transpose(z, (1, 0, 2)))              # rnn: [T, B, H]
    rnn = jnp.transpose(rnn, (1, 0, 2))                         # [B, T, H]

    a1 = jnp.tanh(rnn @ params["wa1"] + params["ba1"])
    scores = a1 @ params["wa2"]                                  # [B, T, 1]
    att = jax.nn.softmax(scores, axis=1)
    out_att = jnp.sum(rnn * att, axis=1)                         # [B, H]
    out = (rnn[:, -1, :] @ params["wo_h"] + out_att @ params["wo_a"]
           + params["bo"])
    return out


if __name__ == "__main__":
    # Small deterministic config
    B, T = 2, 8
    d_feat, hidden, emb_dim, n_instruments, n_classes = 6, 32, 4, 10, 3

    key = jax.random.PRNGKey(0)
    k_p, k_x, k_i = jax.random.split(key, 3)

    params = init_params(k_p, d_feat, hidden, n_instruments, emb_dim, n_classes)
    x_continuous = jax.random.normal(k_x, (B, T, d_feat), jnp.float32)
    x_instrument = jax.random.randint(k_i, (B, T), 0, n_instruments)

    out = alstm_forward(x_continuous, x_instrument, params)
    out = jax.block_until_ready(out)

    ref = jax.block_until_ready(alstm_reference(x_continuous, x_instrument, params))
    assert out.shape == (B, n_classes)
    assert jnp.allclose(out, ref, atol=1e-3, rtol=1e-3), (out, ref)

    print("KERNEL_OK")
</pallas_src>

<mosaic_0001>
module attributes {stable_mosaic.version = 11 : i64} {
  func.func @alstm_kernel(%arg0: memref<64x10xf32, #tpu.memory_space<vmem>>, %arg1: memref<10x32xf32, #tpu.memory_space<vmem>>, %arg2: memref<1x32xf32, #tpu.memory_space<vmem>>, %arg3: memref<32x128xf32, #tpu.memory_space<vmem>>, %arg4: memref<32x128xf32, #tpu.memory_space<vmem>>, %arg5: memref<1x128xf32, #tpu.memory_space<vmem>>, %arg6: memref<64x128xf32, #tpu.memory_space<vmem>>, %arg7: memref<1x128xf32, #tpu.memory_space<vmem>>, %arg8: memref<32x16xf32, #tpu.memory_space<vmem>>, %arg9: memref<1x16xf32, #tpu.memory_space<vmem>>, %arg10: memref<1x16xf32, #tpu.memory_space<vmem>>, %arg11: memref<64x3xf32, #tpu.memory_space<vmem>>, %arg12: memref<1x3xf32, #tpu.memory_space<vmem>>, %arg13: memref<8x3xf32, #tpu.memory_space<vmem>>, %arg14: memref<64x128xf32, #tpu.memory_space<vmem>>) attributes {dimension_semantics = [], scalar_prefetch = 0 : i64, scratch_operands = 1 : i64, tpu.core_type = #tpu.core_type<tc>} {
    %c0 = arith.constant 0 : index
    %c0_0 = arith.constant 0 : index
    %0 = vector.load %arg0[%c0, %c0_0] : memref<64x10xf32, #tpu.memory_space<vmem>>, vector<64x10xf32>
    %c0_1 = arith.constant 0 : index
    %c0_2 = arith.constant 0 : index
    %1 = vector.load %arg1[%c0_1, %c0_2] : memref<10x32xf32, #tpu.memory_space<vmem>>, vector<10x32xf32>
    %cst = arith.constant dense<0.000000e+00> : vector<64x32xf32>
    %2 = tpu.matmul %0, %1, %cst {dimension_numbers = #tpu.dot_dimension_numbers<[1], [0], [0], [1], [0, 0, 1, 1], [], []>} : vector<64x10xf32>, vector<10x32xf32>, vector<64x32xf32> -> vector<64x32xf32>
    %c0_3 = arith.constant 0 : index
    %c0_4 = arith.constant 0 : index
    %3 = vector.load %arg2[%c0_3, %c0_4] : memref<1x32xf32, #tpu.memory_space<vmem>>, vector<1x32xf32>
    %4 = vector.broadcast %3 : vector<1x32xf32> to vector<64x32xf32>
    %5 = arith.addf %2, %4 : vector<64x32xf32>
    %6 = math.tanh %5 : vector<64x32xf32>
    %c0_5 = arith.constant 0 : index
    %c0_6 = arith.constant 0 : index
    %7 = vector.load %arg3[%c0_5, %c0_6] : memref<32x128xf32, #tpu.memory_space<vmem>>, vector<32x128xf32>
    %cst_7 = arith.constant dense<0.000000e+00> : vector<64x128xf32>
    %8 = tpu.matmul %6, %7, %cst_7 {dimension_numbers = #tpu.dot_dimension_numbers<[1], [0], [0], [1], [0, 0, 1, 1], [], []>} : vector<64x32xf32>, vector<32x128xf32>, vector<64x128xf32> -> vector<64x128xf32>
    %c0_8 = arith.constant 0 : index
    %c0_9 = arith.constant 0 : index
    %9 = vector.load %arg5[%c0_8, %c0_9] : memref<1x128xf32, #tpu.memory_space<vmem>>, vector<1x128xf32>
    %10 = vector.broadcast %9 : vector<1x128xf32> to vector<64x128xf32>
    %11 = arith.addf %8, %10 : vector<64x128xf32>
    %c0_10 = arith.constant 0 : index
    %c0_11 = arith.constant 0 : index
    %12 = vector.load %arg14[%c0_10, %c0_11] : memref<64x128xf32, #tpu.memory_space<vmem>>, vector<64x128xf32>
    tpu.vector_store %arg14[%c0_10, %c0_11], %11 {strides = array<i32>} : memref<64x128xf32, #tpu.memory_space<vmem>>, vector<64x128xf32>,
    %c0_12 = arith.constant 0 : index
    %c0_13 = arith.constant 0 : index
    %13 = vector.load %arg4[%c0_12, %c0_13] : memref<32x128xf32, #tpu.memory_space<vmem>>, vector<32x128xf32>
    %c0_14 = arith.constant 0 : index
    %c0_15 = arith.constant 0 : index
    %14 = vector.load %arg6[%c0_14, %c0_15] : memref<64x128xf32, #tpu.memory_space<vmem>>, vector<64x128xf32>
    %c0_16 = arith.constant 0 : index
    %c0_17 = arith.constant 0 : index
    %15 = vector.load %arg7[%c0_16, %c0_17] : memref<1x128xf32, #tpu.memory_space<vmem>>, vector<1x128xf32>
    %16 = vector.shape_cast %15 : vector<1x128xf32> to vector<1x128xf32>
    %17 = vector.broadcast %16 : vector<1x128xf32> to vector<8x128xf32>
    %c0_18 = arith.constant 0 : index
    %c0_19 = arith.constant 0 : index
    %18 = vector.load %arg8[%c0_18, %c0_19] : memref<32x16xf32, #tpu.memory_space<vmem>>, vector<32x16xf32>
    %c0_20 = arith.constant 0 : index
    %c0_21 = arith.constant 0 : index
    %19 = vector.load %arg9[%c0_20, %c0_21] : memref<1x16xf32, #tpu.memory_space<vmem>>, vector<1x16xf32>
    %20 = vector.shape_cast %19 : vector<1x16xf32> to vector<1x16xf32>
    %21 = vector.broadcast %20 : vector<1x16xf32> to vector<8x16xf32>
    %c0_22 = arith.constant 0 : index
    %c0_23 = arith.constant 0 : index
    %22 = vector.load %arg10[%c0_22, %c0_23] : memref<1x16xf32, #tpu.memory_space<vmem>>, vector<1x16xf32>
    %cst_24 = arith.constant 0.000000e+00 : f32
    %23 = vector.broadcast %cst_24 : f32 to vector<8x32xf32>
    %cst_25 = arith.constant 0xFF800000 : f32
    %24 = vector.broadcast %cst_25 : f32 to vector<8x1xf32>
    %cst_26 = arith.constant 0.000000e+00 : f32
    %25 = vector.broadcast %cst_26 : f32 to vector<8x1xf32>
    %cst_27 = arith.constant 0.000000e+00 : f32
    %26 = vector.broadcast %cst_27 : f32 to vector<8x32xf32>
    %c0_i32 = arith.constant 0 : i32
    %c8_i32 = arith.constant 8 : i32
    %27 = arith.muli %c0_i32, %c8_i32 : i32
    %28 = tpu.assume_multiple %27, 8 : i32
    %29 = arith.index_cast %28 : i32 to index
    %c0_28 = arith.constant 0 : index
    %30 = vector.load %arg14[%29, %c0_28] : memref<64x128xf32, #tpu.memory_space<vmem>>, vector<8x128xf32>
    %cst_29 = arith.constant dense<0.000000e+00> : vector<8x128xf32>
    %31 = tpu.matmul %23, %13, %cst_29 {dimension_numbers = #tpu.dot_dimension_numbers<[1], [0], [0], [1], [0, 0, 1, 1], [], []>} : vector<8x32xf32>, vector<32x128xf32>, vector<8x128xf32> -> vector<8x128xf32>
    %32 = arith.addf %30, %31 : vector<8x128xf32>
    %33 = vector.extract_strided_slice %32 {offsets = [0, 0], sizes = [8, 32], strides = [1, 1]} : vector<8x128xf32> to vector<8x32xf32>
    %cst_30 = arith.constant 5.000000e-01 : f32
    %34 = vector.broadcast %cst_30 : f32 to vector<8x32xf32>
    %35 = arith.mulf %34, %33 : vector<8x32xf32>
    %36 = math.tanh %35 : vector<8x32xf32>
    %cst_31 = arith.constant 5.000000e-01 : f32
    %37 = vector.broadcast %cst_31 : f32 to vector<8x32xf32>
    %38 = arith.mulf %37, %36 : vector<8x32xf32>
    %cst_32 = arith.constant 5.000000e-01 : f32
    %39 = vector.broadcast %cst_32 : f32 to vector<8x32xf32>
    %40 = arith.addf %38, %39 : vector<8x32xf32>
    %41 = vector.extract_strided_slice %32 {offsets = [0, 32], sizes = [8, 32], strides = [1, 1]} : vector<8x128xf32> to vector<8x32xf32>
    %cst_33 = arith.constant 5.000000e-01 : f32
    %42 = vector.broadcast %cst_33 : f32 to vector<8x32xf32>
    %43 = arith.mulf %42, %41 : vector<8x32xf32>
    %44 = math.tanh %43 : vector<8x32xf32>
    %cst_34 = arith.constant 5.000000e-01 : f32
    %45 = vector.broadcast %cst_34 : f32 to vector<8x32xf32>
    %46 = arith.mulf %45, %44 : vector<8x32xf32>
    %cst_35 = arith.constant 5.000000e-01 : f32
    %47 = vector.broadcast %cst_35 : f32 to vector<8x32xf32>
    %48 = arith.addf %46, %47 : vector<8x32xf32>
    %49 = vector.extract_strided_slice %32 {offsets = [0, 64], sizes = [8, 32], strides = [1, 1]} : vector<8x128xf32> to vector<8x32xf32>
    %50 = math.tanh %49 : vector<8x32xf32>
    %51 = vector.extract_strided_slice %32 {offsets = [0, 96], sizes = [8, 32], strides = [1, 1]} : vector<8x128xf32> to vector<8x32xf32>
    %cst_36 = arith.constant 5.000000e-01 : f32
    %52 = vector.broadcast %cst_36 : f32 to vector<8x32xf32>
    %53 = arith.mulf %52, %51 : vector<8x32xf32>
    %54 = math.tanh %53 : vector<8x32xf32>
    %cst_37 = arith.constant 5.000000e-01 : f32
    %55 = vector.broadcast %cst_37 : f32 to vector<8x32xf32>
    %56 = arith.mulf %55, %54 : vector<8x32xf32>
    %cst_38 = arith.constant 5.000000e-01 : f32
    %57 = vector.broadcast %cst_38 : f32 to vector<8x32xf32>
    %58 = arith.addf %56, %57 : vector<8x32xf32>
    %59 = arith.mulf %48, %23 : vector<8x32xf32>
    %60 = arith.mulf %40, %50 : vector<8x32xf32>
    %61 = arith.addf %59, %60 : vector<8x32xf32>
    %62 = math.tanh %61 : vector<8x32xf32>
    %63 = arith.mulf %58, %62 : vector<8x32xf32>
    %64 = tpu.concatenate %63, %23 in 1 : vector<8x32xf32>, vector<8x32xf32> -> vector<8x64xf32>
    %cst_39 = arith.constant dense<0.000000e+00> : vector<8x128xf32>
    %65 = tpu.matmul %64, %14, %cst_39 {dimension_numbers = #tpu.dot_dimension_numbers<[1], [0], [0], [1], [0, 0, 1, 1], [], []>} : vector<8x64xf32>, vector<64x128xf32>, vector<8x128xf32> -> vector<8x128xf32>
    %66 = arith.addf %65, %17 : vector<8x128xf32>
    %67 = vector.extract_strided_slice %66 {offsets = [0, 0], sizes = [8, 32], strides = [1, 1]} : vector<8x128xf32> to vector<8x32xf32>
    %cst_40 = arith.constant 5.000000e-01 : f32
    %68 = vector.broadcast %cst_40 : f32 to vector<8x32xf32>
    %69 = arith.mulf %68, %67 : vector<8x32xf32>
    %70 = math.tanh %69 : vector<8x32xf32>
    %cst_41 = arith.constant 5.000000e-01 : f32
    %71 = vector.broadcast %cst_41 : f32 to vector<8x32xf32>
    %72 = arith.mulf %71, %70 : vector<8x32xf32>
    %cst_42 = arith.constant 5.000000e-01 : f32
    %73 = vector.broadcast %cst_42 : f32 to vector<8x32xf32>
    %74 = arith.addf %72, %73 : vector<8x32xf32>
    %75 = vector.extract_strided_slice %66 {offsets = [0, 32], sizes = [8, 32], strides = [1, 1]} : vector<8x128xf32> to vector<8x32xf32>
    %cst_43 = arith.constant 5.000000e-01 : f32
    %76 = vector.broadcast %cst_43 : f32 to vector<8x32xf32>
    %77 = arith.mulf %76, %75 : vector<8x32xf32>
    %78 = math.tanh %77 : vector<8x32xf32>
    %cst_44 = arith.constant 5.000000e-01 : f32
    %79 = vector.broadcast %cst_44 : f32 to vector<8x32xf32>
    %80 = arith.mulf %79, %78 : vector<8x32xf32>
    %cst_45 = arith.constant 5.000000e-01 : f32
    %81 = vector.broadcast %cst_45 : f32 to vector<8x32xf32>
    %82 = arith.addf %80, %81 : vector<8x32xf32>
    %83 = vector.extract_strided_slice %66 {offsets = [0, 64], sizes = [8, 32], strides = [1, 1]} : vector<8x128xf32> to vector<8x32xf32>
    %84 = math.tanh %83 : vector<8x32xf32>
    %85 = vector.extract_strided_slice %66 {offsets = [0, 96], sizes = [8, 32], strides = [1, 1]} : vector<8x128xf32> to vector<8x32xf32>
    %cst_46 = arith.constant 5.000000e-01 : f32
    %86 = vector.broadcast %cst_46 : f32 to vector<8x32xf32>
    %87 = arith.mulf %86, %85 : vector<8x32xf32>
    %88 = math.tanh %87 : vector<8x32xf32>
    %cst_47 = arith.constant 5.000000e-01 : f32
    %89 = vector.broadcast %cst_47 : f32 to vector<8x32xf32>
    %90 = arith.mulf %89, %88 : vector<8x32xf32>
    %cst_48 = arith.constant 5.000000e-01 : f32
    %91 = vector.broadcast %cst_48 : f32 to vector<8x32xf32>
    %92 = arith.addf %90, %91 : vector<8x32xf32>
    %93 = arith.mulf %82, %23 : vector<8x32xf32>
    %94 = arith.mulf %74, %84 : vector<8x32xf32>
    %95 = arith.addf %93, %94 : vector<8x32xf32>
    %96 = math.tanh %95 : vector<8x32xf32>
    %97 = arith.mulf %92, %96 : vector<8x32xf32>
    %cst_49 = arith.constant dense<0.000000e+00> : vector<8x16xf32>
    %98 = tpu.matmul %97, %18, %cst_49 {dimension_numbers = #tpu.dot_dimension_numbers<[1], [0], [0], [1], [0, 0, 1, 1], [], []>} : vector<8x32xf32>, vector<32x16xf32>, vector<8x16xf32> -> vector<8x16xf32>
    %99 = arith.addf %98, %21 : vector<8x16xf32>
    %100 = math.tanh %99 : vector<8x16xf32>
    %101 = vector.broadcast %22 : vector<1x16xf32> to vector<8x16xf32>
    %102 = arith.mulf %100, %101 : vector<8x16xf32>
    %cst_50 = arith.constant dense<0.000000e+00> : vector<8xf32>
    %103 = vector.multi_reduction <add>, %102, %cst_50 [1] : vector<8x16xf32> to vector<8xf32>
    %104 = vector.shape_cast %103 : vector<8xf32> to vector<8x1xf32>
    %105 = arith.maximumf %24, %104 : vector<8x1xf32>
    %106 = arith.subf %24, %105 : vector<8x1xf32>
    %107 = math.exp %106 : vector<8x1xf32>
    %108 = arith.subf %104, %105 : vector<8x1xf32>
    %109 = math.exp %108 : vector<8x1xf32>
    %110 = arith.mulf %25, %107 : vector<8x1xf32>
    %111 = arith.addf %110, %109 : vector<8x1xf32>
    %112 = vector.broadcast %107 : vector<8x1xf32> to vector<8x32xf32>
    %113 = arith.mulf %26, %112 : vector<8x32xf32>
    %114 = vector.broadcast %109 : vector<8x1xf32> to vector<8x32xf32>
    %115 = arith.mulf %114, %97 : vector<8x32xf32>
    %116 = arith.addf %113, %115 : vector<8x32xf32>
    %c1_i32 = arith.constant 1 : i32
    %c8_i32_51 = arith.constant 8 : i32
    %117 = arith.muli %c1_i32, %c8_i32_51 : i32
    %118 = tpu.assume_multiple %117, 8 : i32
    %119 = arith.index_cast %118 : i32 to index
    %c0_52 = arith.constant 0 : index
    %120 = vector.load %arg14[%119, %c0_52] : memref<64x128xf32, #tpu.memory_space<vmem>>, vector<8x128xf32>
    %cst_53 = arith.constant dense<0.000000e+00> : vector<8x128xf32>
    %121 = tpu.matmul %63, %13, %cst_53 {dimension_numbers = #tpu.dot_dimension_numbers<[1], [0], [0], [1], [0, 0, 1, 1], [], []>} : vector<8x32xf32>, vector<32x128xf32>, vector<8x128xf32> -> vector<8x128xf32>
    %122 = arith.addf %120, %121 : vector<8x128xf32>
    %123 = vector.extract_strided_slice %122 {offsets = [0, 0], sizes = [8, 32], strides = [1, 1]} : vector<8x128xf32> to vector<8x32xf32>
    %cst_54 = arith.constant 5.000000e-01 : f32
    %124 = vector.broadcast %cst_54 : f32 to vector<8x32xf32>
    %125 = arith.mulf %124, %123 : vector<8x32xf32>
    %126 = math.tanh %125 : vector<8x32xf32>
    %cst_55 = arith.constant 5.000000e-01 : f32
    %127 = vector.broadcast %cst_55 : f32 to vector<8x32xf32>
    %128 = arith.mulf %127, %126 : vector<8x32xf32>
    %cst_56 = arith.constant 5.000000e-01 : f32
    %129 = vector.broadcast %cst_56 : f32 to vector<8x32xf32>
    %130 = arith.addf %128, %129 : vector<8x32xf32>
    %131 = vector.extract_strided_slice %122 {offsets = [0, 32], sizes = [8, 32], strides = [1, 1]} : vector<8x128xf32> to vector<8x32xf32>
    %cst_57 = arith.constant 5.000000e-01 : f32
    %132 = vector.broadcast %cst_57 : f32 to vector<8x32xf32>
    %133 = arith.mulf %132, %131 : vector<8x32xf32>
    %134 = math.tanh %133 : vector<8x32xf32>
    %cst_58 = arith.constant 5.000000e-01 : f32
    %135 = vector.broadcast %cst_58 : f32 to vector<8x32xf32>
    %136 = arith.mulf %135, %134 : vector<8x32xf32>
    %cst_59 = arith.constant 5.000000e-01 : f32
    %137 = vector.broadcast %cst_59 : f32 to vector<8x32xf32>
    %138 = arith.addf %136, %137 : vector<8x32xf32>
    %139 = vector.extract_strided_slice %122 {offsets = [0, 64], sizes = [8, 32], strides = [1, 1]} : vector<8x128xf32> to vector<8x32xf32>
    %140 = math.tanh %139 : vector<8x32xf32>
    %141 = vector.extract_strided_slice %122 {offsets = [0, 96], sizes = [8, 32], strides = [1, 1]} : vector<8x128xf32> to vector<8x32xf32>
    %cst_60 = arith.constant 5.000000e-01 : f32
    %142 = vector.broadcast %cst_60 : f32 to vector<8x32xf32>
    %143 = arith.mulf %142, %141 : vector<8x32xf32>
    %144 = math.tanh %143 : vector<8x32xf32>
    %cst_61 = arith.constant 5.000000e-01 : f32
    %145 = vector.broadcast %cst_61 : f32 to vector<8x32xf32>
    %146 = arith.mulf %145, %144 : vector<8x32xf32>
    %cst_62 = arith.constant 5.000000e-01 : f32
    %147 = vector.broadcast %cst_62 : f32 to vector<8x32xf32>
    %148 = arith.addf %146, %147 : vector<8x32xf32>
    %149 = arith.mulf %138, %61 : vector<8x32xf32>
    %150 = arith.mulf %130, %140 : vector<8x32xf32>
    %151 = arith.addf %149, %150 : vector<8x32xf32>
    %152 = math.tanh %151 : vector<8x32xf32>
    %153 = arith.mulf %148, %152 : vector<8x32xf32>
    %154 = tpu.concatenate %153, %97 in 1 : vector<8x32xf32>, vector<8x32xf32> -> vector<8x64xf32>
    %cst_63 = arith.constant dense<0.000000e+00> : vector<8x128xf32>
    %155 = tpu.matmul %154, %14, %cst_63 {dimension_numbers = #tpu.dot_dimension_numbers<[1], [0], [0], [1], [0, 0, 1, 1], [], []>} : vector<8x64xf32>, vector<64x128xf32>, vector<8x128xf32> -> vector<8x128xf32>
    %156 = arith.addf %155, %17 : vector<8x128xf32>
    %157 = vector.extract_strided_slice %156 {offsets = [0, 0], sizes = [8, 32], strides = [1, 1]} : vector<8x128xf32> to vector<8x32xf32>
    %cst_64 = arith.constant 5.000000e-01 : f32
    %158 = vector.broadcast %cst_64 : f32 to vector<8x32xf32>
    %159 = arith.mulf %158, %157 : vector<8x32xf32>
    %160 = math.tanh %159 : vector<8x32xf32>
    %cst_65 = arith.constant 5.000000e-01 : f32
    %161 = vector.broadcast %cst_65 : f32 to vector<8x32xf32>
    %162 = arith.mulf %161, %160 : vector<8x32xf32>
    %cst_66 = arith.constant 5.000000e-01 : f32
    %163 = vector.broadcast %cst_66 : f32 to vector<8x32xf32>
    %164 = arith.addf %162, %163 : vector<8x32xf32>
    %165 = vector.extract_strided_slice %156 {offsets = [0, 32], sizes = [8, 32], strides = [1, 1]} : vector<8x128xf32> to vector<8x32xf32>
    %cst_67 = arith.constant 5.000000e-01 : f32
    %166 = vector.broadcast %cst_67 : f32 to vector<8x32xf32>
    %167 = arith.mulf %166, %165 : vector<8x32xf32>
    %168 = math.tanh %167 : vector<8x32xf32>
    %cst_68 = arith.constant 5.000000e-01 : f32
    %169 = vector.broadcast %cst_68 : f32 to vector<8x32xf32>
    %170 = arith.mulf %169, %168 : vector<8x32xf32>
    %cst_69 = arith.constant 5.000000e-01 : f32
    %171 = vector.broadcast %cst_69 : f32 to vector<8x32xf32>
    %172 = arith.addf %170, %171 : vector<8x32xf32>
    %173 = vector.extract_strided_slice %156 {offsets = [0, 64], sizes = [8, 32], strides = [1, 1]} : vector<8x128xf32> to vector<8x32xf32>
    %174 = math.tanh %173 : vector<8x32xf32>
    %175 = vector.extract_strided_slice %156 {offsets = [0, 96], sizes = [8, 32], strides = [1, 1]} : vector<8x128xf32> to vector<8x32xf32>
    %cst_70 = arith.constant 5.000000e-01 : f32
    %176 = vector.broadcast %cst_70 : f32 to vector<8x32xf32>
    %177 = arith.mulf %176, %175 : vector<8x32xf32>
    %178 = math.tanh %177 : vector<8x32xf32>
    %cst_71 = arith.constant 5.000000e-01 : f32
    %179 = vector.broadcast %cst_71 : f32 to vector<8x32xf32>
    %180 = arith.mulf %179, %178 : vector<8x32xf32>
    %cst_72 = arith.constant 5.000000e-01 : f32
    %181 = vector.broadcast %cst_72 : f32 to vector<8x32xf32>
    %182 = arith.addf %180, %181 : vector<8x32xf32>
    %183 = arith.mulf %172, %95 : vector<8x32xf32>
    %184 = arith.mulf %164, %174 : vector<8x32xf32>
    %185 = arith.addf %183, %184 : vector<8x32xf32>
    %186 = math.tanh %185 : vector<8x32xf32>
    %187 = arith.mulf %182, %186 : vector<8x32xf32>
    %cst_73 = arith.constant dense<0.000000e+00> : vector<8x16xf32>
    %188 = tpu.matmul %187, %18, %cst_73 {dimension_numbers = #tpu.dot_dimension_numbers<[1], [0], [0], [1], [0, 0, 1, 1], [], []>} : vector<8x32xf32>, vector<32x16xf32>, vector<8x16xf32> -> vector<8x16xf32>
    %189 = arith.addf %188, %21 : vector<8x16xf32>
    %190 = math.tanh %189 : vector<8x16xf32>
    %191 = vector.broadcast %22 : vector<1x16xf32> to vector<8x16xf32>
    %192 = arith.mulf %190, %191 : vector<8x16xf32>
    %cst_74 = arith.constant dense<0.000000e+00> : vector<8xf32>
    %193 = vector.multi_reduction <add>, %192, %cst_74 [1] : vector<8x16xf32> to vector<8xf32>
    %194 = vector.shape_cast %193 : vector<8xf32> to vector<8x1xf32>
    %195 = arith.maximumf %105, %194 : vector<8x1xf32>
    %196 = arith.subf %105, %195 : vector<8x1xf32>
    %197 = math.exp %196 : vector<8x1xf32>
    %198 = arith.subf %194, %195 : vector<8x1xf32>
    %199 = math.exp %198 : vector<8x1xf32>
    %200 = arith.mulf %111, %197 : vector<8x1xf32>
    %201 = arith.addf %200, %199 : vector<8x1xf32>
    %202 = vector.broadcast %197 : vector<8x1xf32> to vector<8x32xf32>
    %203 = arith.mulf %116, %202 : vector<8x32xf32>
    %204 = vector.broadcast %199 : vector<8x1xf32> to vector<8x32xf32>
    %205 = arith.mulf %204, %187 : vector<8x32xf32>
    %206 = arith.addf %203, %205 : vector<8x32xf32>
    %c2_i32 = arith.constant 2 : i32
    %c8_i32_75 = arith.constant 8 : i32
    %207 = arith.muli %c2_i32, %c8_i32_75 : i32
    %208 = tpu.assume_multiple %207, 8 : i32
    %209 = arith.index_cast %208 : i32 to index
    %c0_76 = arith.constant 0 : index
    %210 = vector.load %arg14[%209, %c0_76] : memref<64x128xf32, #tpu.memory_space<vmem>>, vector<8x128xf32>
    %cst_77 = arith.constant dense<0.000000e+00> : vector<8x128xf32>
    %211 = tpu.matmul %153, %13, %cst_77 {dimension_numbers = #tpu.dot_dimension_numbers<[1], [0], [0], [1], [0, 0, 1, 1], [], []>} : vector<8x32xf32>, vector<32x128xf32>, vector<8x128xf32> -> vector<8x128xf32>
    %212 = arith.addf %210, %211 : vector<8x128xf32>
    %213 = vector.extract_strided_slice %212 {offsets = [0, 0], sizes = [8, 32], strides = [1, 1]} : vector<8x128xf32> to vector<8x32xf32>
    %cst_78 = arith.constant 5.000000e-01 : f32
    %214 = vector.broadcast %cst_78 : f32 to vector<8x32xf32>
    %215 = arith.mulf %214, %213 : vector<8x32xf32>
    %216 = math.tanh %215 : vector<8x32xf32>
    %cst_79 = arith.constant 5.000000e-01 : f32
    %217 = vector.broadcast %cst_79 : f32 to vector<8x32xf32>
    %218 = arith.mulf %217, %216 : vector<8x32xf32>
    %cst_80 = arith.constant 5.000000e-01 : f32
    %219 = vector.broadcast %cst_80 : f32 to vector<8x32xf32>
    %220 = arith.addf %218, %219 : vector<8x32xf32>
    %221 = vector.extract_strided_slice %212 {offsets = [0, 32], sizes = [8, 32], strides = [1, 1]} : vector<8x128xf32> to vector<8x32xf32>
    %cst_81 = arith.constant 5.000000e-01 : f32
    %222 = vector.broadcast %cst_81 : f32 to vector<8x32xf32>
    %223 = arith.mulf %222, %221 : vector<8x32xf32>
    %224 = math.tanh %223 : vector<8x32xf32>
    %cst_82 = arith.constant 5.000000e-01 : f32
    %225 = vector.broadcast %cst_82 : f32 to vector<8x32xf32>
    %226 = arith.mulf %225, %224 : vector<8x32xf32>
    %cst_83 = arith.constant 5.000000e-01 : f32
    %227 = vector.broadcast %cst_83 : f32 to vector<8x32xf32>
    %228 = arith.addf %226, %227 : vector<8x32xf32>
    %229 = vector.extract_strided_slice %212 {offsets = [0, 64], sizes = [8, 32], strides = [1, 1]} : vector<8x128xf32> to vector<8x32xf32>
    %230 = math.tanh %229 : vector<8x32xf32>
    %231 = vector.extract_strided_slice %212 {offsets = [0, 96], sizes = [8, 32], strides = [1, 1]} : vector<8x128xf32> to vector<8x32xf32>
    %cst_84 = arith.constant 5.000000e-01 : f32
    %232 = vector.broadcast %cst_84 : f32 to vector<8x32xf32>
    %233 = arith.mulf %232, %231 : vector<8x32xf32>
    %234 = math.tanh %233 : vector<8x32xf32>
    %cst_85 = arith.constant 5.000000e-01 : f32
    %235 = vector.broadcast %cst_85 : f32 to vector<8x32xf32>
    %236 = arith.mulf %235, %234 : vector<8x32xf32>
    %cst_86 = arith.constant 5.000000e-01 : f32
    %237 = vector.broadcast %cst_86 : f32 to vector<8x32xf32>
    %238 = arith.addf %236, %237 : vector<8x32xf32>
    %239 = arith.mulf %228, %151 : vector<8x32xf32>
    %240 = arith.mulf %220, %230 : vector<8x32xf32>
    %241 = arith.addf %239, %240 : vector<8x32xf32>
    %242 = math.tanh %241 : vector<8x32xf32>
    %243 = arith.mulf %238, %242 : vector<8x32xf32>
    %244 = tpu.concatenate %243, %187 in 1 : vector<8x32xf32>, vector<8x32xf32> -> vector<8x64xf32>
    %cst_87 = arith.constant dense<0.000000e+00> : vector<8x128xf32>
    %245 = tpu.matmul %244, %14, %cst_87 {dimension_numbers = #tpu.dot_dimension_numbers<[1], [0], [0], [1], [0, 0, 1, 1], [], []>} : vector<8x64xf32>, vector<64x128xf32>, vector<8x128xf32> -> vector<8x128xf32>
    %246 = arith.addf %245, %17 : vector<8x128xf32>
    %247 = vector.extract_strided_slice %246 {offsets = [0, 0], sizes = [8, 32], strides = [1, 1]} : vector<8x128xf32> to vector<8x32xf32>
    %cst_88 = arith.constant 5.000000e-01 : f32
    %248 = vector.broadcast %cst_88 : f32 to vector<8x32xf32>
    %249 = arith.mulf %248, %247 : vector<8x32xf32>
    %250 = math.tanh %249 : vector<8x32xf32>
    %cst_89 = arith.constant 5.000000e-01 : f32
    %251 = vector.broadcast %cst_89 : f32 to vector<8x32xf32>
    %252 = arith.mulf %251, %250 : vector<8x32xf32>
    %cst_90 = arith.constant 5.000000e-01 : f32
    %253 = vector.broadcast %cst_90 : f32 to vector<8x32xf32>
    %254 = arith.addf %252, %253 : vector<8x32xf32>
    %255 = vector.extract_strided_slice %246 {offsets = [0, 32], sizes = [8, 32], strides = [1, 1]} : vector<8x128xf32> to vector<8x32xf32>
    %cst_91 = arith.constant 5.000000e-01 : f32
    %256 = vector.broadcast %cst_91 : f32 to vector<8x32xf32>
    %257 = arith.mulf %256, %255 : vector<8x32xf32>
    %258 = math.tanh %257 : vector<8x32xf32>
    %cst_92 = arith.constant 5.000000e-01 : f32
    %259 = vector.broadcast %cst_92 : f32 to vector<8x32xf32>
    %260 = arith.mulf %259, %258 : vector<8x32xf32>
    %cst_93 = arith.constant 5.000000e-01 : f32
    %261 = vector.broadcast %cst_93 : f32 to vector<8x32xf32>
    %262 = arith.addf %260, %261 : vector<8x32xf32>
    %263 = vector.extract_strided_slice %246 {offsets = [0, 64], sizes = [8, 32], strides = [1, 1]} : vector<8x128xf32> to vector<8x32xf32>
    %264 = math.tanh %263 : vector<8x32xf32>
    %265 = vector.extract_strided_slice %246 {offsets = [0, 96], sizes = [8, 32], strides = [1, 1]} : vector<8x128xf32> to vector<8x32xf32>
    %cst_94 = arith.constant 5.000000e-01 : f32
    %266 = vector.broadcast %cst_94 : f32 to vector<8x32xf32>
    %267 = arith.mulf %266, %265 : vector<8x32xf32>
    %268 = math.tanh %267 : vector<8x32xf32>
    %cst_95 = arith.constant 5.000000e-01 : f32
    %269 = vector.broadcast %cst_95 : f32 to vector<8x32xf32>
    %270 = arith.mulf %269, %268 : vector<8x32xf32>
    %cst_96 = arith.constant 5.000000e-01 : f32
    %271 = vector.broadcast %cst_96 : f32 to vector<8x32xf32>
    %272 = arith.addf %270, %271 : vector<8x32xf32>
    %273 = arith.mulf %262, %185 : vector<8x32xf32>
    %274 = arith.mulf %254, %264 : vector<8x32xf32>
    %275 = arith.addf %273, %274 : vector<8x32xf32>
    %276 = math.tanh %275 : vector<8x32xf32>
    %277 = arith.mulf %272, %276 : vector<8x32xf32>
    %cst_97 = arith.constant dense<0.000000e+00> : vector<8x16xf32>
    %278 = tpu.matmul %277, %18, %cst_97 {dimension_numbers = #tpu.dot_dimension_numbers<[1], [0], [0], [1], [0, 0, 1, 1], [], []>} : vector<8x32xf32>, vector<32x16xf32>, vector<8x16xf32> -> vector<8x16xf32>
    %279 = arith.addf %278, %21 : vector<8x16xf32>
    %280 = math.tanh %279 : vector<8x16xf32>
    %281 = vector.broadcast %22 : vector<1x16xf32> to vector<8x16xf32>
    %282 = arith.mulf %280, %281 : vector<8x16xf32>
    %cst_98 = arith.constant dense<0.000000e+00> : vector<8xf32>
    %283 = vector.multi_reduction <add>, %282, %cst_98 [1] : vector<8x16xf32> to vector<8xf32>
    %284 = vector.shape_cast %283 : vector<8xf32> to vector<8x1xf32>
    %285 = arith.maximumf %195, %284 : vector<8x1xf32>
    %286 = arith.subf %195, %285 : vector<8x1xf32>
    %287 = math.exp %286 : vector<8x1xf32>
    %288 = arith.subf %284, %285 : vector<8x1xf32>
    %289 = math.exp %288 : vector<8x1xf32>
    %290 = arith.mulf %201, %287 : vector<8x1xf32>
    %291 = arith.addf %290, %289 : vector<8x1xf32>
    %292 = vector.broadcast %287 : vector<8x1xf32> to vector<8x32xf32>
    %293 = arith.mulf %206, %292 : vector<8x32xf32>
    %294 = vector.broadcast %289 : vector<8x1xf32> to vector<8x32xf32>
    %295 = arith.mulf %294, %277 : vector<8x32xf32>
    %296 = arith.addf %293, %295 : vector<8x32xf32>
    %c3_i32 = arith.constant 3 : i32
    %c8_i32_99 = arith.constant 8 : i32
    %297 = arith.muli %c3_i32, %c8_i32_99 : i32
    %298 = tpu.assume_multiple %297, 8 : i32
    %299 = arith.index_cast %298 : i32 to index
    %c0_100 = arith.constant 0 : index
    %300 = vector.load %arg14[%299, %c0_100] : memref<64x128xf32, #tpu.memory_space<vmem>>, vector<8x128xf32>
    %cst_101 = arith.constant dense<0.000000e+00> : vector<8x128xf32>
    %301 = tpu.matmul %243, %13, %cst_101 {dimension_numbers = #tpu.dot_dimension_numbers<[1], [0], [0], [1], [0, 0, 1, 1], [], []>} : vector<8x32xf32>, vector<32x128xf32>, vector<8x128xf32> -> vector<8x128xf32>
    %302 = arith.addf %300, %301 : vector<8x128xf32>
    %303 = vector.extract_strided_slice %302 {offsets = [0, 0], sizes = [8, 32], strides = [1, 1]} : vector<8x128xf32> to vector<8x32xf32>
    %cst_102 = arith.constant 5.000000e-01 : f32
    %304 = vector.broadcast %cst_102 : f32 to vector<8x32xf32>
    %305 = arith.mulf %304, %303 : vector<8x32xf32>
    %306 = math.tanh %305 : vector<8x32xf32>
    %cst_103 = arith.constant 5.000000e-01 : f32
    %307 = vector.broadcast %cst_103 : f32 to vector<8x32xf32>
    %308 = arith.mulf %307, %306 : vector<8x32xf32>
    %cst_104 = arith.constant 5.000000e-01 : f32
    %309 = vector.broadcast %cst_104 : f32 to vector<8x32xf32>
    %310 = arith.addf %308, %309 : vector<8x32xf32>
    %311 = vector.extract_strided_slice %302 {offsets = [0, 32], sizes = [8, 32], strides = [1, 1]} : vector<8x128xf32> to vector<8x32xf32>
    %cst_105 = arith.constant 5.000000e-01 : f32
    %312 = vector.broadcast %cst_105 : f32 to vector<8x32xf32>
    %313 = arith.mulf %312, %311 : vector<8x32xf32>
    %314 = math.tanh %313 : vector<8x32xf32>
    %cst_106 = arith.constant 5.000000e-01 : f32
    %315 = vector.broadcast %cst_106 : f32 to vector<8x32xf32>
    %316 = arith.mulf %315, %314 : vector<8x32xf32>
    %cst_107 = arith.constant 5.000000e-01 : f32
    %317 = vector.broadcast %cst_107 : f32 to vector<8x32xf32>
    %318 = arith.addf %316, %317 : vector<8x32xf32>
    %319 = vector.extract_strided_slice %302 {offsets = [0, 64], sizes = [8, 32], strides = [1, 1]} : vector<8x128xf32> to vector<8x32xf32>
    %320 = math.tanh %319 : vector<8x32xf32>
    %321 = vector.extract_strided_slice %302 {offsets = [0, 96], sizes = [8, 32], strides = [1, 1]} : vector<8x128xf32> to vector<8x32xf32>
    %cst_108 = arith.constant 5.000000e-01 : f32
    %322 = vector.broadcast %cst_108 : f32 to vector<8x32xf32>
    %323 = arith.mulf %322, %321 : vector<8x32xf32>
    %324 = math.tanh %323 : vector<8x32xf32>
    %cst_109 = arith.constant 5.000000e-01 : f32
    %325 = vector.broadcast %cst_109 : f32 to vector<8x32xf32>
    %326 = arith.mulf %325, %324 : vector<8x32xf32>
    %cst_110 = arith.constant 5.000000e-01 : f32
    %327 = vector.broadcast %cst_110 : f32 to vector<8x32xf32>
    %328 = arith.addf %326, %327 : vector<8x32xf32>
    %329 = arith.mulf %318, %241 : vector<8x32xf32>
    %330 = arith.mulf %310, %320 : vector<8x32xf32>
    %331 = arith.addf %329, %330 : vector<8x32xf32>
    %332 = math.tanh %331 : vector<8x32xf32>
    %333 = arith.mulf %328, %332 : vector<8x32xf32>
    %334 = tpu.concatenate %333, %277 in 1 : vector<8x32xf32>, vector<8x32xf32> -> vector<8x64xf32>
    %cst_111 = arith.constant dense<0.000000e+00> : vector<8x128xf32>
    %335 = tpu.matmul %334, %14, %cst_111 {dimension_numbers = #tpu.dot_dimension_numbers<[1], [0], [0], [1], [0, 0, 1, 1], [], []>} : vector<8x64xf32>, vector<64x128xf32>, vector<8x128xf32> -> vector<8x128xf32>
    %336 = arith.addf %335, %17 : vector<8x128xf32>
    %337 = vector.extract_strided_slice %336 {offsets = [0, 0], sizes = [8, 32], strides = [1, 1]} : vector<8x128xf32> to vector<8x32xf32>
    %cst_112 = arith.constant 5.000000e-01 : f32
    %338 = vector.broadcast %cst_112 : f32 to vector<8x32xf32>
    %339 = arith.mulf %338, %337 : vector<8x32xf32>
    %340 = math.tanh %339 : vector<8x32xf32>
    %cst_113 = arith.constant 5.000000e-01 : f32
    %341 = vector.broadcast %cst_113 : f32 to vector<8x32xf32>
    %342 = arith.mulf %341, %340 : vector<8x32xf32>
    %cst_114 = arith.constant 5.000000e-01 : f32
    %343 = vector.broadcast %cst_114 : f32 to vector<8x32xf32>
    %344 = arith.addf %342, %343 : vector<8x32xf32>
    %345 = vector.extract_strided_slice %336 {offsets = [0, 32], sizes = [8, 32], strides = [1, 1]} : vector<8x128xf32> to vector<8x32xf32>
    %cst_115 = arith.constant 5.000000e-01 : f32
    %346 = vector.broadcast %cst_115 : f32 to vector<8x32xf32>
    %347 = arith.mulf %346, %345 : vector<8x32xf32>
    %348 = math.tanh %347 : vector<8x32xf32>
    %cst_116 = arith.constant 5.000000e-01 : f32
    %349 = vector.broadcast %cst_116 : f32 to vector<8x32xf32>
    %350 = arith.mulf %349, %348 : vector<8x32xf32>
    %cst_117 = arith.constant 5.000000e-01 : f32
    %351 = vector.broadcast %cst_117 : f32 to vector<8x32xf32>
    %352 = arith.addf %350, %351 : vector<8x32xf32>
    %353 = vector.extract_strided_slice %336 {offsets = [0, 64], sizes = [8, 32], strides = [1, 1]} : vector<8x128xf32> to vector<8x32xf32>
    %354 = math.tanh %353 : vector<8x32xf32>
    %355 = vector.extract_strided_slice %336 {offsets = [0, 96], sizes = [8, 32], strides = [1, 1]} : vector<8x128xf32> to vector<8x32xf32>
    %cst_118 = arith.constant 5.000000e-01 : f32
    %356 = vector.broadcast %cst_118 : f32 to vector<8x32xf32>
    %357 = arith.mulf %356, %355 : vector<8x32xf32>
    %358 = math.tanh %357 : vector<8x32xf32>
    %cst_119 = arith.constant 5.000000e-01 : f32
    %359 = vector.broadcast %cst_119 : f32 to vector<8x32xf32>
    %360 = arith.mulf %359, %358 : vector<8x32xf32>
    %cst_120 = arith.constant 5.000000e-01 : f32
    %361 = vector.broadcast %cst_120 : f32 to vector<8x32xf32>
    %362 = arith.addf %360, %361 : vector<8x32xf32>
    %363 = arith.mulf %352, %275 : vector<8x32xf32>
    %364 = arith.mulf %344, %354 : vector<8x32xf32>
    %365 = arith.addf %363, %364 : vector<8x32xf32>
    %366 = math.tanh %365 : vector<8x32xf32>
    %367 = arith.mulf %362, %366 : vector<8x32xf32>
    %cst_121 = arith.constant dense<0.000000e+00> : vector<8x16xf32>
    %368 = tpu.matmul %367, %18, %cst_121 {dimension_numbers = #tpu.dot_dimension_numbers<[1], [0], [0], [1], [0, 0, 1, 1], [], []>} : vector<8x32xf32>, vector<32x16xf32>, vector<8x16xf32> -> vector<8x16xf32>
    %369 = arith.addf %368, %21 : vector<8x16xf32>
    %370 = math.tanh %369 : vector<8x16xf32>
    %371 = vector.broadcast %22 : vector<1x16xf32> to vector<8x16xf32>
    %372 = arith.mulf %370, %371 : vector<8x16xf32>
    %cst_122 = arith.constant dense<0.000000e+00> : vector<8xf32>
    %373 = vector.multi_reduction <add>, %372, %cst_122 [1] : vector<8x16xf32> to vector<8xf32>
    %374 = vector.shape_cast %373 : vector<8xf32> to vector<8x1xf32>
    %375 = arith.maximumf %285, %374 : vector<8x1xf32>
    %376 = arith.subf %285, %375 : vector<8x1xf32>
    %377 = math.exp %376 : vector<8x1xf32>
    %378 = arith.subf %374, %375 : vector<8x1xf32>
    %379 = math.exp %378 : vector<8x1xf32>
    %380 = arith.mulf %291, %377 : vector<8x1xf32>
    %381 = arith.addf %380, %379 : vector<8x1xf32>
    %382 = vector.broadcast %377 : vector<8x1xf32> to vector<8x32xf32>
    %383 = arith.mulf %296, %382 : vector<8x32xf32>
    %384 = vector.broadcast %379 : vector<8x1xf32> to vector<8x32xf32>
    %385 = arith.mulf %384, %367 : vector<8x32xf32>
    %386 = arith.addf %383, %385 : vector<8x32xf32>
    %c4_i32 = arith.constant 4 : i32
    %c8_i32_123 = arith.constant 8 : i32
    %387 = arith.muli %c4_i32, %c8_i32_123 : i32
    %388 = tpu.assume_multiple %387, 8 : i32
    %389 = arith.index_cast %388 : i32 to index
    %c0_124 = arith.constant 0 : index
    %390 = vector.load %arg14[%389, %c0_124] : memref<64x128xf32, #tpu.memory_space<vmem>>, vector<8x128xf32>
    %cst_125 = arith.constant dense<0.000000e+00> : vector<8x128xf32>
    %391 = tpu.matmul %333, %13, %cst_125 {dimension_numbers = #tpu.dot_dimension_numbers<[1], [0], [0], [1], [0, 0, 1, 1], [], []>} : vector<8x32xf32>, vector<32x128xf32>, vector<8x128xf32> -> vector<8x128xf32>
    %392 = arith.addf %390, %391 : vector<8x128xf32>
    %393 = vector.extract_strided_slice %392 {offsets = [0, 0], sizes = [8, 32], strides = [1, 1]} : vector<8x128xf32> to vector<8x32xf32>
    %cst_126 = arith.constant 5.000000e-01 : f32
    %394 = vector.broadcast %cst_126 : f32 to vector<8x32xf32>
    %395 = arith.mulf %394, %393 : vector<8x32xf32>
    %396 = math.tanh %395 : vector<8x32xf32>
    %cst_127 = arith.constant 5.000000e-01 : f32
    %397 = vector.broadcast %cst_127 : f32 to vector<8x32xf32>
    %398 = arith.mulf %397, %396 : vector<8x32xf32>
    %cst_128 = arith.constant 5.000000e-01 : f32
    %399 = vector.broadcast %cst_128 : f32 to vector<8x32xf32>
    %400 = arith.addf %398, %399 : vector<8x32xf32>
    %401 = vector.extract_strided_slice %392 {offsets = [0, 32], sizes = [8, 32], strides = [1, 1]} : vector<8x128xf32> to vector<8x32xf32>
    %cst_129 = arith.constant 5.000000e-01 : f32
    %402 = vector.broadcast %cst_129 : f32 to vector<8x32xf32>
    %403 = arith.mulf %402, %401 : vector<8x32xf32>
    %404 = math.tanh %403 : vector<8x32xf32>
    %cst_130 = arith.constant 5.000000e-01 : f32
    %405 = vector.broadcast %cst_130 : f32 to vector<8x32xf32>
    %406 = arith.mulf %405, %404 : vector<8x32xf32>
    %cst_131 = arith.constant 5.000000e-01 : f32
    %407 = vector.broadcast %cst_131 : f32 to vector<8x32xf32>
    %408 = arith.addf %406, %407 : vector<8x32xf32>
    %409 = vector.extract_strided_slice %392 {offsets = [0, 64], sizes = [8, 32], strides = [1, 1]} : vector<8x128xf32> to vector<8x32xf32>
    %410 = math.tanh %409 : vector<8x32xf32>
    %411 = vector.extract_strided_slice %392 {offsets = [0, 96], sizes = [8, 32], strides = [1, 1]} : vector<8x128xf32> to vector<8x32xf32>
    %cst_132 = arith.constant 5.000000e-01 : f32
    %412 = vector.broadcast %cst_132 : f32 to vector<8x32xf32>
    %413 = arith.mulf %412, %411 : vector<8x32xf32>
    %414 = math.tanh %413 : vector<8x32xf32>
    %cst_133 = arith.constant 5.000000e-01 : f32
    %415 = vector.broadcast %cst_133 : f32 to vector<8x32xf32>
    %416 = arith.mulf %415, %414 : vector<8x32xf32>
    %cst_134 = arith.constant 5.000000e-01 : f32
    %417 = vector.broadcast %cst_134 : f32 to vector<8x32xf32>
    %418 = arith.addf %416, %417 : vector<8x32xf32>
    %419 = arith.mulf %408, %331 : vector<8x32xf32>
    %420 = arith.mulf %400, %410 : vector<8x32xf32>
    %421 = arith.addf %419, %420 : vector<8x32xf32>
    %422 = math.tanh %421 : vector<8x32xf32>
    %423 = arith.mulf %418, %422 : vector<8x32xf32>
    %424 = tpu.concatenate %423, %367 in 1 : vector<8x32xf32>, vector<8x32xf32> -> vector<8x64xf32>
    %cst_135 = arith.constant dense<0.000000e+00> : vector<8x128xf32>
    %425 = tpu.matmul %424, %14, %cst_135 {dimension_numbers = #tpu.dot_dimension_numbers<[1], [0], [0], [1], [0, 0, 1, 1], [], []>} : vector<8x64xf32>, vector<64x128xf32>, vector<8x128xf32> -> vector<8x128xf32>
    %426 = arith.addf %425, %17 : vector<8x128xf32>
    %427 = vector.extract_strided_slice %426 {offsets = [0, 0], sizes = [8, 32], strides = [1, 1]} : vector<8x128xf32> to vector<8x32xf32>
    %cst_136 = arith.constant 5.000000e-01 : f32
    %428 = vector.broadcast %cst_136 : f32 to vector<8x32xf32>
    %429 = arith.mulf %428, %427 : vector<8x32xf32>
    %430 = math.tanh %429 : vector<8x32xf32>
    %cst_137 = arith.constant 5.000000e-01 : f32
    %431 = vector.broadcast %cst_137 : f32 to vector<8x32xf32>
    %432 = arith.mulf %431, %430 : vector<8x32xf32>
    %cst_138 = arith.constant 5.000000e-01 : f32
    %433 = vector.broadcast %cst_138 : f32 to vector<8x32xf32>
    %434 = arith.addf %432, %433 : vector<8x32xf32>
    %435 = vector.extract_strided_slice %426 {offsets = [0, 32], sizes = [8, 32], strides = [1, 1]} : vector<8x128xf32> to vector<8x32xf32>
    %cst_139 = arith.constant 5.000000e-01 : f32
    %436 = vector.broadcast %cst_139 : f32 to vector<8x32xf32>
    %437 = arith.mulf %436, %435 : vector<8x32xf32>
    %438 = math.tanh %437 : vector<8x32xf32>
    %cst_140 = arith.constant 5.000000e-01 : f32
    %439 = vector.broadcast %cst_140 : f32 to vector<8x32xf32>
    %440 = arith.mulf %439, %438 : vector<8x32xf32>
    %cst_141 = arith.constant 5.000000e-01 : f32
    %441 = vector.broadcast %cst_141 : f32 to vector<8x32xf32>
    %442 = arith.addf %440, %441 : vector<8x32xf32>
    %443 = vector.extract_strided_slice %426 {offsets = [0, 64], sizes = [8, 32], strides = [1, 1]} : vector<8x128xf32> to vector<8x32xf32>
    %444 = math.tanh %443 : vector<8x32xf32>
    %445 = vector.extract_strided_slice %426 {offsets = [0, 96], sizes = [8, 32], strides = [1, 1]} : vector<8x128xf32> to vector<8x32xf32>
    %cst_142 = arith.constant 5.000000e-01 : f32
    %446 = vector.broadcast %cst_142 : f32 to vector<8x32xf32>
    %447 = arith.mulf %446, %445 : vector<8x32xf32>
    %448 = math.tanh %447 : vector<8x32xf32>
    %cst_143 = arith.constant 5.000000e-01 : f32
    %449 = vector.broadcast %cst_143 : f32 to vector<8x32xf32>
    %450 = arith.mulf %449, %448 : vector<8x32xf32>
    %cst_144 = arith.constant 5.000000e-01 : f32
    %451 = vector.broadcast %cst_144 : f32 to vector<8x32xf32>
    %452 = arith.addf %450, %451 : vector<8x32xf32>
    %453 = arith.mulf %442, %365 : vector<8x32xf32>
    %454 = arith.mulf %434, %444 : vector<8x32xf32>
    %455 = arith.addf %453, %454 : vector<8x32xf32>
    %456 = math.tanh %455 : vector<8x32xf32>
    %457 = arith.mulf %452, %456 : vector<8x32xf32>
    %cst_145 = arith.constant dense<0.000000e+00> : vector<8x16xf32>
    %458 = tpu.matmul %457, %18, %cst_145 {dimension_numbers = #tpu.dot_dimension_numbers<[1], [0], [0], [1], [0, 0, 1, 1], [], []>} : vector<8x32xf32>, vector<32x16xf32>, vector<8x16xf32> -> vector<8x16xf32>
    %459 = arith.addf %458, %21 : vector<8x16xf32>
    %460 = math.tanh %459 : vector<8x16xf32>
    %461 = vector.broadcast %22 : vector<1x16xf32> to vector<8x16xf32>
    %462 = arith.mulf %460, %461 : vector<8x16xf32>
    %cst_146 = arith.constant dense<0.000000e+00> : vector<8xf32>
    %463 = vector.multi_reduction <add>, %462, %cst_146 [1] : vector<8x16xf32> to vector<8xf32>
    %464 = vector.shape_cast %463 : vector<8xf32> to vector<8x1xf32>
    %465 = arith.maximumf %375, %464 : vector<8x1xf32>
    %466 = arith.subf %375, %465 : vector<8x1xf32>
    %467 = math.exp %466 : vector<8x1xf32>
    %468 = arith.subf %464, %465 : vector<8x1xf32>
    %469 = math.exp %468 : vector<8x1xf32>
    %470 = arith.mulf %381, %467 : vector<8x1xf32>
    %471 = arith.addf %470, %469 : vector<8x1xf32>
    %472 = vector.broadcast %467 : vector<8x1xf32> to vector<8x32xf32>
    %473 = arith.mulf %386, %472 : vector<8x32xf32>
    %474 = vector.broadcast %469 : vector<8x1xf32> to vector<8x32xf32>
    %475 = arith.mulf %474, %457 : vector<8x32xf32>
    %476 = arith.addf %473, %475 : vector<8x32xf32>
    %c5_i32 = arith.constant 5 : i32
    %c8_i32_147 = arith.constant 8 : i32
    %477 = arith.muli %c5_i32, %c8_i32_147 : i32
    %478 = tpu.assume_multiple %477, 8 : i32
    %479 = arith.index_cast %478 : i32 to index
    %c0_148 = arith.constant 0 : index
    %480 = vector.load %arg14[%479, %c0_148] : memref<64x128xf32, #tpu.memory_space<vmem>>, vector<8x128xf32>
    %cst_149 = arith.constant dense<0.000000e+00> : vector<8x128xf32>
    %481 = tpu.matmul %423, %13, %cst_149 {dimension_numbers = #tpu.dot_dimension_numbers<[1], [0], [0], [1], [0, 0, 1, 1], [], []>} : vector<8x32xf32>, vector<32x128xf32>, vector<8x128xf32> -> vector<8x128xf32>
    %482 = arith.addf %480, %481 : vector<8x128xf32>
    %483 = vector.extract_strided_slice %482 {offsets = [0, 0], sizes = [8, 32], strides = [1, 1]} : vector<8x128xf32> to vector<8x32xf32>
    %cst_150 = arith.constant 5.000000e-01 : f32
    %484 = vector.broadcast %cst_150 : f32 to vector<8x32xf32>
    %485 = arith.mulf %484, %483 : vector<8x32xf32>
    %486 = math.tanh %485 : vector<8x32xf32>
    %cst_151 = arith.constant 5.000000e-01 : f32
    %487 = vector.broadcast %cst_151 : f32 to vector<8x32xf32>
    %488 = arith.mulf %487, %486 : vector<8x32xf32>
    %cst_152 = arith.constant 5.000000e-01 : f32
    %489 = vector.broadcast %cst_152 : f32 to vector<8x32xf32>
    %490 = arith.addf %488, %489 : vector<8x32xf32>
    %491 = vector.extract_strided_slice %482 {offsets = [0, 32], sizes = [8, 32], strides = [1, 1]} : vector<8x128xf32> to vector<8x32xf32>
    %cst_153 = arith.constant 5.000000e-01 : f32
    %492 = vector.broadcast %cst_153 : f32 to vector<8x32xf32>
    %493 = arith.mulf %492, %491 : vector<8x32xf32>
    %494 = math.tanh %493 : vector<8x32xf32>
    %cst_154 = arith.constant 5.000000e-01 : f32
    %495 = vector.broadcast %cst_154 : f32 to vector<8x32xf32>
    %496 = arith.mulf %495, %494 : vector<8x32xf32>
    %cst_155 = arith.constant 5.000000e-01 : f32
    %497 = vector.broadcast %cst_155 : f32 to vector<8x32xf32>
    %498 = arith.addf %496, %497 : vector<8x32xf32>
    %499 = vector.extract_strided_slice %482 {offsets = [0, 64], sizes = [8, 32], strides = [1, 1]} : vector<8x128xf32> to vector<8x32xf32>
    %500 = math.tanh %499 : vector<8x32xf32>
    %501 = vector.extract_strided_slice %482 {offsets = [0, 96], sizes = [8, 32], strides = [1, 1]} : vector<8x128xf32> to vector<8x32xf32>
    %cst_156 = arith.constant 5.000000e-01 : f32
    %502 = vector.broadcast %cst_156 : f32 to vector<8x32xf32>
    %503 = arith.mulf %502, %501 : vector<8x32xf32>
    %504 = math.tanh %503 : vector<8x32xf32>
    %cst_157 = arith.constant 5.000000e-01 : f32
    %505 = vector.broadcast %cst_157 : f32 to vector<8x32xf32>
    %506 = arith.mulf %505, %504 : vector<8x32xf32>
    %cst_158 = arith.constant 5.000000e-01 : f32
    %507 = vector.broadcast %cst_158 : f32 to vector<8x32xf32>
    %508 = arith.addf %506, %507 : vector<8x32xf32>
    %509 = arith.mulf %498, %421 : vector<8x32xf32>
    %510 = arith.mulf %490, %500 : vector<8x32xf32>
    %511 = arith.addf %509, %510 : vector<8x32xf32>
    %512 = math.tanh %511 : vector<8x32xf32>
    %513 = arith.mulf %508, %512 : vector<8x32xf32>
    %514 = tpu.concatenate %513, %457 in 1 : vector<8x32xf32>, vector<8x32xf32> -> vector<8x64xf32>
    %cst_159 = arith.constant dense<0.000000e+00> : vector<8x128xf32>
    %515 = tpu.matmul %514, %14, %cst_159 {dimension_numbers = #tpu.dot_dimension_numbers<[1], [0], [0], [1], [0, 0, 1, 1], [], []>} : vector<8x64xf32>, vector<64x128xf32>, vector<8x128xf32> -> vector<8x128xf32>
    %516 = arith.addf %515, %17 : vector<8x128xf32>
    %517 = vector.extract_strided_slice %516 {offsets = [0, 0], sizes = [8, 32], strides = [1, 1]} : vector<8x128xf32> to vector<8x32xf32>
    %cst_160 = arith.constant 5.000000e-01 : f32
    %518 = vector.broadcast %cst_160 : f32 to vector<8x32xf32>
    %519 = arith.mulf %518, %517 : vector<8x32xf32>
    %520 = math.tanh %519 : vector<8x32xf32>
    %cst_161 = arith.constant 5.000000e-01 : f32
    %521 = vector.broadcast %cst_161 : f32 to vector<8x32xf32>
    %522 = arith.mulf %521, %520 : vector<8x32xf32>
    %cst_162 = arith.constant 5.000000e-01 : f32
    %523 = vector.broadcast %cst_162 : f32 to vector<8x32xf32>
    %524 = arith.addf %522, %523 : vector<8x32xf32>
    %525 = vector.extract_strided_slice %516 {offsets = [0, 32], sizes = [8, 32], strides = [1, 1]} : vector<8x128xf32> to vector<8x32xf32>
    %cst_163 = arith.constant 5.000000e-01 : f32
    %526 = vector.broadcast %cst_163 : f32 to vector<8x32xf32>
    %527 = arith.mulf %526, %525 : vector<8x32xf32>
    %528 = math.tanh %527 : vector<8x32xf32>
    %cst_164 = arith.constant 5.000000e-01 : f32
    %529 = vector.broadcast %cst_164 : f32 to vector<8x32xf32>
    %530 = arith.mulf %529, %528 : vector<8x32xf32>
    %cst_165 = arith.constant 5.000000e-01 : f32
    %531 = vector.broadcast %cst_165 : f32 to vector<8x32xf32>
    %532 = arith.addf %530, %531 : vector<8x32xf32>
    %533 = vector.extract_strided_slice %516 {offsets = [0, 64], sizes = [8, 32], strides = [1, 1]} : vector<8x128xf32> to vector<8x32xf32>
    %534 = math.tanh %533 : vector<8x32xf32>
    %535 = vector.extract_strided_slice %516 {offsets = [0, 96], sizes = [8, 32], strides = [1, 1]} : vector<8x128xf32> to vector<8x32xf32>
    %cst_166 = arith.constant 5.000000e-01 : f32
    %536 = vector.broadcast %cst_166 : f32 to vector<8x32xf32>
    %537 = arith.mulf %536, %535 : vector<8x32xf32>
    %538 = math.tanh %537 : vector<8x32xf32>
    %cst_167 = arith.constant 5.000000e-01 : f32
    %539 = vector.broadcast %cst_167 : f32 to vector<8x32xf32>
    %540 = arith.mulf %539, %538 : vector<8x32xf32>
    %cst_168 = arith.constant 5.000000e-01 : f32
    %541 = vector.broadcast %cst_168 : f32 to vector<8x32xf32>
    %542 = arith.addf %540, %541 : vector<8x32xf32>
    %543 = arith.mulf %532, %455 : vector<8x32xf32>
    %544 = arith.mulf %524, %534 : vector<8x32xf32>
    %545 = arith.addf %543, %544 : vector<8x32xf32>
    %546 = math.tanh %545 : vector<8x32xf32>
    %547 = arith.mulf %542, %546 : vector<8x32xf32>
    %cst_169 = arith.constant dense<0.000000e+00> : vector<8x16xf32>
    %548 = tpu.matmul %547, %18, %cst_169 {dimension_numbers = #tpu.dot_dimension_numbers<[1], [0], [0], [1], [0, 0, 1, 1], [], []>} : vector<8x32xf32>, vector<32x16xf32>, vector<8x16xf32> -> vector<8x16xf32>
    %549 = arith.addf %548, %21 : vector<8x16xf32>
    %550 = math.tanh %549 : vector<8x16xf32>
    %551 = vector.broadcast %22 : vector<1x16xf32> to vector<8x16xf32>
    %552 = arith.mulf %550, %551 : vector<8x16xf32>
    %cst_170 = arith.constant dense<0.000000e+00> : vector<8xf32>
    %553 = vector.multi_reduction <add>, %552, %cst_170 [1] : vector<8x16xf32> to vector<8xf32>
    %554 = vector.shape_cast %553 : vector<8xf32> to vector<8x1xf32>
    %555 = arith.maximumf %465, %554 : vector<8x1xf32>
    %556 = arith.subf %465, %555 : vector<8x1xf32>
    %557 = math.exp %556 : vector<8x1xf32>
    %558 = arith.subf %554, %555 : vector<8x1xf32>
    %559 = math.exp %558 : vector<8x1xf32>
    %560 = arith.mulf %471, %557 : vector<8x1xf32>
    %561 = arith.addf %560, %559 : vector<8x1xf32>
    %562 = vector.broadcast %557 : vector<8x1xf32> to vector<8x32xf32>
    %563 = arith.mulf %476, %562 : vector<8x32xf32>
    %564 = vector.broadcast %559 : vector<8x1xf32> to vector<8x32xf32>
    %565 = arith.mulf %564, %547 : vector<8x32xf32>
    %566 = arith.addf %563, %565 : vector<8x32xf32>
    %c6_i32 = arith.constant 6 : i32
    %c8_i32_171 = arith.constant 8 : i32
    %567 = arith.muli %c6_i32, %c8_i32_171 : i32
    %568 = tpu.assume_multiple %567, 8 : i32
    %569 = arith.index_cast %568 : i32 to index
    %c0_172 = arith.constant 0 : index
    %570 = vector.load %arg14[%569, %c0_172] : memref<64x128xf32, #tpu.memory_space<vmem>>, vector<8x128xf32>
    %cst_173 = arith.constant dense<0.000000e+00> : vector<8x128xf32>
    %571 = tpu.matmul %513, %13, %cst_173 {dimension_numbers = #tpu.dot_dimension_numbers<[1], [0], [0], [1], [0, 0, 1, 1], [], []>} : vector<8x32xf32>, vector<32x128xf32>, vector<8x128xf32> -> vector<8x128xf32>
    %572 = arith.addf %570, %571 : vector<8x128xf32>
    %573 = vector.extract_strided_slice %572 {offsets = [0, 0], sizes = [8, 32], strides = [1, 1]} : vector<8x128xf32> to vector<8x32xf32>
    %cst_174 = arith.constant 5.000000e-01 : f32
    %574 = vector.broadcast %cst_174 : f32 to vector<8x32xf32>
    %575 = arith.mulf %574, %573 : vector<8x32xf32>
    %576 = math.tanh %575 : vector<8x32xf32>
    %cst_175 = arith.constant 5.000000e-01 : f32
    %577 = vector.broadcast %cst_175 : f32 to vector<8x32xf32>
    %578 = arith.mulf %577, %576 : vector<8x32xf32>
    %cst_176 = arith.constant 5.000000e-01 : f32
    %579 = vector.broadcast %cst_176 : f32 to vector<8x32xf32>
    %580 = arith.addf %578, %579 : vector<8x32xf32>
    %581 = vector.extract_strided_slice %572 {offsets = [0, 32], sizes = [8, 32], strides = [1, 1]} : vector<8x128xf32> to vector<8x32xf32>
    %cst_177 = arith.constant 5.000000e-01 : f32
    %582 = vector.broadcast %cst_177 : f32 to vector<8x32xf32>
    %583 = arith.mulf %582, %581 : vector<8x32xf32>
    %584 = math.tanh %583 : vector<8x32xf32>
    %cst_178 = arith.constant 5.000000e-01 : f32
    %585 = vector.broadcast %cst_178 : f32 to vector<8x32xf32>
    %586 = arith.mulf %585, %584 : vector<8x32xf32>
    %cst_179 = arith.constant 5.000000e-01 : f32
    %587 = vector.broadcast %cst_179 : f32 to vector<8x32xf32>
    %588 = arith.addf %586, %587 : vector<8x32xf32>
    %589 = vector.extract_strided_slice %572 {offsets = [0, 64], sizes = [8, 32], strides = [1, 1]} : vector<8x128xf32> to vector<8x32xf32>
    %590 = math.tanh %589 : vector<8x32xf32>
    %591 = vector.extract_strided_slice %572 {offsets = [0, 96], sizes = [8, 32], strides = [1, 1]} : vector<8x128xf32> to vector<8x32xf32>
    %cst_180 = arith.constant 5.000000e-01 : f32
    %592 = vector.broadcast %cst_180 : f32 to vector<8x32xf32>
    %593 = arith.mulf %592, %591 : vector<8x32xf32>
    %594 = math.tanh %593 : vector<8x32xf32>
    %cst_181 = arith.constant 5.000000e-01 : f32
    %595 = vector.broadcast %cst_181 : f32 to vector<8x32xf32>
    %596 = arith.mulf %595, %594 : vector<8x32xf32>
    %cst_182 = arith.constant 5.000000e-01 : f32
    %597 = vector.broadcast %cst_182 : f32 to vector<8x32xf32>
    %598 = arith.addf %596, %597 : vector<8x32xf32>
    %599 = arith.mulf %588, %511 : vector<8x32xf32>
    %600 = arith.mulf %580, %590 : vector<8x32xf32>
    %601 = arith.addf %599, %600 : vector<8x32xf32>
    %602 = math.tanh %601 : vector<8x32xf32>
    %603 = arith.mulf %598, %602 : vector<8x32xf32>
    %604 = tpu.concatenate %603, %547 in 1 : vector<8x32xf32>, vector<8x32xf32> -> vector<8x64xf32>
    %cst_183 = arith.constant dense<0.000000e+00> : vector<8x128xf32>
    %605 = tpu.matmul %604, %14, %cst_183 {dimension_numbers = #tpu.dot_dimension_numbers<[1], [0], [0], [1], [0, 0, 1, 1], [], []>} : vector<8x64xf32>, vector<64x128xf32>, vector<8x128xf32> -> vector<8x128xf32>
    %606 = arith.addf %605, %17 : vector<8x128xf32>
    %607 = vector.extract_strided_slice %606 {offsets = [0, 0], sizes = [8, 32], strides = [1, 1]} : vector<8x128xf32> to vector<8x32xf32>
    %cst_184 = arith.constant 5.000000e-01 : f32
    %608 = vector.broadcast %cst_184 : f32 to vector<8x32xf32>
    %609 = arith.mulf %608, %607 : vector<8x32xf32>
    %610 = math.tanh %609 : vector<8x32xf32>
    %cst_185 = arith.constant 5.000000e-01 : f32
    %611 = vector.broadcast %cst_185 : f32 to vector<8x32xf32>
    %612 = arith.mulf %611, %610 : vector<8x32xf32>
    %cst_186 = arith.constant 5.000000e-01 : f32
    %613 = vector.broadcast %cst_186 : f32 to vector<8x32xf32>
    %614 = arith.addf %612, %613 : vector<8x32xf32>
    %615 = vector.extract_strided_slice %606 {offsets = [0, 32], sizes = [8, 32], strides = [1, 1]} : vector<8x128xf32> to vector<8x32xf32>
    %cst_187 = arith.constant 5.000000e-01 : f32
    %616 = vector.broadcast %cst_187 : f32 to vector<8x32xf32>
    %617 = arith.mulf %616, %615 : vector<8x32xf32>
    %618 = math.tanh %617 : vector<8x32xf32>
    %cst_188 = arith.constant 5.000000e-01 : f32
    %619 = vector.broadcast %cst_188 : f32 to vector<8x32xf32>
    %620 = arith.mulf %619, %618 : vector<8x32xf32>
    %cst_189 = arith.constant 5.000000e-01 : f32
    %621 = vector.broadcast %cst_189 : f32 to vector<8x32xf32>
    %622 = arith.addf %620, %621 : vector<8x32xf32>
    %623 = vector.extract_strided_slice %606 {offsets = [0, 64], sizes = [8, 32], strides = [1, 1]} : vector<8x128xf32> to vector<8x32xf32>
    %624 = math.tanh %623 : vector<8x32xf32>
    %625 = vector.extract_strided_slice %606 {offsets = [0, 96], sizes = [8, 32], strides = [1, 1]} : vector<8x128xf32> to vector<8x32xf32>
    %cst_190 = arith.constant 5.000000e-01 : f32
    %626 = vector.broadcast %cst_190 : f32 to vector<8x32xf32>
    %627 = arith.mulf %626, %625 : vector<8x32xf32>
    %628 = math.tanh %627 : vector<8x32xf32>
    %cst_191 = arith.constant 5.000000e-01 : f32
    %629 = vector.broadcast %cst_191 : f32 to vector<8x32xf32>
    %630 = arith.mulf %629, %628 : vector<8x32xf32>
    %cst_192 = arith.constant 5.000000e-01 : f32
    %631 = vector.broadcast %cst_192 : f32 to vector<8x32xf32>
    %632 = arith.addf %630, %631 : vector<8x32xf32>
    %633 = arith.mulf %622, %545 : vector<8x32xf32>
    %634 = arith.mulf %614, %624 : vector<8x32xf32>
    %635 = arith.addf %633, %634 : vector<8x32xf32>
    %636 = math.tanh %635 : vector<8x32xf32>
    %637 = arith.mulf %632, %636 : vector<8x32xf32>
    %cst_193 = arith.constant dense<0.000000e+00> : vector<8x16xf32>
    %638 = tpu.matmul %637, %18, %cst_193 {dimension_numbers = #tpu.dot_dimension_numbers<[1], [0], [0], [1], [0, 0, 1, 1], [], []>} : vector<8x32xf32>, vector<32x16xf32>, vector<8x16xf32> -> vector<8x16xf32>
    %639 = arith.addf %638, %21 : vector<8x16xf32>
    %640 = math.tanh %639 : vector<8x16xf32>
    %641 = vector.broadcast %22 : vector<1x16xf32> to vector<8x16xf32>
    %642 = arith.mulf %640, %641 : vector<8x16xf32>
    %cst_194 = arith.constant dense<0.000000e+00> : vector<8xf32>
    %643 = vector.multi_reduction <add>, %642, %cst_194 [1] : vector<8x16xf32> to vector<8xf32>
    %644 = vector.shape_cast %643 : vector<8xf32> to vector<8x1xf32>
    %645 = arith.maximumf %555, %644 : vector<8x1xf32>
    %646 = arith.subf %555, %645 : vector<8x1xf32>
    %647 = math.exp %646 : vector<8x1xf32>
    %648 = arith.subf %644, %645 : vector<8x1xf32>
    %649 = math.exp %648 : vector<8x1xf32>
    %650 = arith.mulf %561, %647 : vector<8x1xf32>
    %651 = arith.addf %650, %649 : vector<8x1xf32>
    %652 = vector.broadcast %647 : vector<8x1xf32> to vector<8x32xf32>
    %653 = arith.mulf %566, %652 : vector<8x32xf32>
    %654 = vector.broadcast %649 : vector<8x1xf32> to vector<8x32xf32>
    %655 = arith.mulf %654, %637 : vector<8x32xf32>
    %656 = arith.addf %653, %655 : vector<8x32xf32>
    %c7_i32 = arith.constant 7 : i32
    %c8_i32_195 = arith.constant 8 : i32
    %657 = arith.muli %c7_i32, %c8_i32_195 : i32
    %658 = tpu.assume_multiple %657, 8 : i32
    %659 = arith.index_cast %658 : i32 to index
    %c0_196 = arith.constant 0 : index
    %660 = vector.load %arg14[%659, %c0_196] : memref<64x128xf32, #tpu.memory_space<vmem>>, vector<8x128xf32>
    %cst_197 = arith.constant dense<0.000000e+00> : vector<8x128xf32>
    %661 = tpu.matmul %603, %13, %cst_197 {dimension_numbers = #tpu.dot_dimension_numbers<[1], [0], [0], [1], [0, 0, 1, 1], [], []>} : vector<8x32xf32>, vector<32x128xf32>, vector<8x128xf32> -> vector<8x128xf32>
    %662 = arith.addf %660, %661 : vector<8x128xf32>
    %663 = vector.extract_strided_slice %662 {offsets = [0, 0], sizes = [8, 32], strides = [1, 1]} : vector<8x128xf32> to vector<8x32xf32>
    %cst_198 = arith.constant 5.000000e-01 : f32
    %664 = vector.broadcast %cst_198 : f32 to vector<8x32xf32>
    %665 = arith.mulf %664, %663 : vector<8x32xf32>
    %666 = math.tanh %665 : vector<8x32xf32>
    %cst_199 = arith.constant 5.000000e-01 : f32
    %667 = vector.broadcast %cst_199 : f32 to vector<8x32xf32>
    %668 = arith.mulf %667, %666 : vector<8x32xf32>
    %cst_200 = arith.constant 5.000000e-01 : f32
    %669 = vector.broadcast %cst_200 : f32 to vector<8x32xf32>
    %670 = arith.addf %668, %669 : vector<8x32xf32>
    %671 = vector.extract_strided_slice %662 {offsets = [0, 32], sizes = [8, 32], strides = [1, 1]} : vector<8x128xf32> to vector<8x32xf32>
    %cst_201 = arith.constant 5.000000e-01 : f32
    %672 = vector.broadcast %cst_201 : f32 to vector<8x32xf32>
    %673 = arith.mulf %672, %671 : vector<8x32xf32>
    %674 = math.tanh %673 : vector<8x32xf32>
    %cst_202 = arith.constant 5.000000e-01 : f32
    %675 = vector.broadcast %cst_202 : f32 to vector<8x32xf32>
    %676 = arith.mulf %675, %674 : vector<8x32xf32>
    %cst_203 = arith.constant 5.000000e-01 : f32
    %677 = vector.broadcast %cst_203 : f32 to vector<8x32xf32>
    %678 = arith.addf %676, %677 : vector<8x32xf32>
    %679 = vector.extract_strided_slice %662 {offsets = [0, 64], sizes = [8, 32], strides = [1, 1]} : vector<8x128xf32> to vector<8x32xf32>
    %680 = math.tanh %679 : vector<8x32xf32>
    %681 = vector.extract_strided_slice %662 {offsets = [0, 96], sizes = [8, 32], strides = [1, 1]} : vector<8x128xf32> to vector<8x32xf32>
    %cst_204 = arith.constant 5.000000e-01 : f32
    %682 = vector.broadcast %cst_204 : f32 to vector<8x32xf32>
    %683 = arith.mulf %682, %681 : vector<8x32xf32>
    %684 = math.tanh %683 : vector<8x32xf32>
    %cst_205 = arith.constant 5.000000e-01 : f32
    %685 = vector.broadcast %cst_205 : f32 to vector<8x32xf32>
    %686 = arith.mulf %685, %684 : vector<8x32xf32>
    %cst_206 = arith.constant 5.000000e-01 : f32
    %687 = vector.broadcast %cst_206 : f32 to vector<8x32xf32>
    %688 = arith.addf %686, %687 : vector<8x32xf32>
    %689 = arith.mulf %678, %601 : vector<8x32xf32>
    %690 = arith.mulf %670, %680 : vector<8x32xf32>
    %691 = arith.addf %689, %690 : vector<8x32xf32>
    %692 = math.tanh %691 : vector<8x32xf32>
    %693 = arith.mulf %688, %692 : vector<8x32xf32>
    %694 = tpu.concatenate %693, %637 in 1 : vector<8x32xf32>, vector<8x32xf32> -> vector<8x64xf32>
    %cst_207 = arith.constant dense<0.000000e+00> : vector<8x128xf32>
    %695 = tpu.matmul %694, %14, %cst_207 {dimension_numbers = #tpu.dot_dimension_numbers<[1], [0], [0], [1], [0, 0, 1, 1], [], []>} : vector<8x64xf32>, vector<64x128xf32>, vector<8x128xf32> -> vector<8x128xf32>
    %696 = arith.addf %695, %17 : vector<8x128xf32>
    %697 = vector.extract_strided_slice %696 {offsets = [0, 0], sizes = [8, 32], strides = [1, 1]} : vector<8x128xf32> to vector<8x32xf32>
    %cst_208 = arith.constant 5.000000e-01 : f32
    %698 = vector.broadcast %cst_208 : f32 to vector<8x32xf32>
    %699 = arith.mulf %698, %697 : vector<8x32xf32>
    %700 = math.tanh %699 : vector<8x32xf32>
    %cst_209 = arith.constant 5.000000e-01 : f32
    %701 = vector.broadcast %cst_209 : f32 to vector<8x32xf32>
    %702 = arith.mulf %701, %700 : vector<8x32xf32>
    %cst_210 = arith.constant 5.000000e-01 : f32
    %703 = vector.broadcast %cst_210 : f32 to vector<8x32xf32>
    %704 = arith.addf %702, %703 : vector<8x32xf32>
    %705 = vector.extract_strided_slice %696 {offsets = [0, 32], sizes = [8, 32], strides = [1, 1]} : vector<8x128xf32> to vector<8x32xf32>
    %cst_211 = arith.constant 5.000000e-01 : f32
    %706 = vector.broadcast %cst_211 : f32 to vector<8x32xf32>
    %707 = arith.mulf %706, %705 : vector<8x32xf32>
    %708 = math.tanh %707 : vector<8x32xf32>
    %cst_212 = arith.constant 5.000000e-01 : f32
    %709 = vector.broadcast %cst_212 : f32 to vector<8x32xf32>
    %710 = arith.mulf %709, %708 : vector<8x32xf32>
    %cst_213 = arith.constant 5.000000e-01 : f32
    %711 = vector.broadcast %cst_213 : f32 to vector<8x32xf32>
    %712 = arith.addf %710, %711 : vector<8x32xf32>
    %713 = vector.extract_strided_slice %696 {offsets = [0, 64], sizes = [8, 32], strides = [1, 1]} : vector<8x128xf32> to vector<8x32xf32>
    %714 = math.tanh %713 : vector<8x32xf32>
    %715 = vector.extract_strided_slice %696 {offsets = [0, 96], sizes = [8, 32], strides = [1, 1]} : vector<8x128xf32> to vector<8x32xf32>
    %cst_214 = arith.constant 5.000000e-01 : f32
    %716 = vector.broadcast %cst_214 : f32 to vector<8x32xf32>
    %717 = arith.mulf %716, %715 : vector<8x32xf32>
    %718 = math.tanh %717 : vector<8x32xf32>
    %cst_215 = arith.constant 5.000000e-01 : f32
    %719 = vector.broadcast %cst_215 : f32 to vector<8x32xf32>
    %720 = arith.mulf %719, %718 : vector<8x32xf32>
    %cst_216 = arith.constant 5.000000e-01 : f32
    %721 = vector.broadcast %cst_216 : f32 to vector<8x32xf32>
    %722 = arith.addf %720, %721 : vector<8x32xf32>
    %723 = arith.mulf %712, %635 : vector<8x32xf32>
    %724 = arith.mulf %704, %714 : vector<8x32xf32>
    %725 = arith.addf %723, %724 : vector<8x32xf32>
    %726 = math.tanh %725 : vector<8x32xf32>
    %727 = arith.mulf %722, %726 : vector<8x32xf32>
    %cst_217 = arith.constant dense<0.000000e+00> : vector<8x16xf32>
    %728 = tpu.matmul %727, %18, %cst_217 {dimension_numbers = #tpu.dot_dimension_numbers<[1], [0], [0], [1], [0, 0, 1, 1], [], []>} : vector<8x32xf32>, vector<32x16xf32>, vector<8x16xf32> -> vector<8x16xf32>
    %729 = arith.addf %728, %21 : vector<8x16xf32>
    %730 = math.tanh %729 : vector<8x16xf32>
    %731 = vector.broadcast %22 : vector<1x16xf32> to vector<8x16xf32>
    %732 = arith.mulf %730, %731 : vector<8x16xf32>
    %cst_218 = arith.constant dense<0.000000e+00> : vector<8xf32>
    %733 = vector.multi_reduction <add>, %732, %cst_218 [1] : vector<8x16xf32> to vector<8xf32>
    %734 = vector.shape_cast %733 : vector<8xf32> to vector<8x1xf32>
    %735 = arith.maximumf %645, %734 : vector<8x1xf32>
    %736 = arith.subf %645, %735 : vector<8x1xf32>
    %737 = math.exp %736 : vector<8x1xf32>
    %738 = arith.subf %734, %735 : vector<8x1xf32>
    %739 = math.exp %738 : vector<8x1xf32>
    %740 = arith.mulf %651, %737 : vector<8x1xf32>
    %741 = arith.addf %740, %739 : vector<8x1xf32>
    %742 = vector.broadcast %737 : vector<8x1xf32> to vector<8x32xf32>
    %743 = arith.mulf %656, %742 : vector<8x32xf32>
    %744 = vector.broadcast %739 : vector<8x1xf32> to vector<8x32xf32>
    %745 = arith.mulf %744, %727 : vector<8x32xf32>
    %746 = arith.addf %743, %745 : vector<8x32xf32>
    %c8_i32_219 = arith.constant 8 : i32
    %747 = tpu.reciprocal %741 {approx = true} : vector<8x1xf32> -> vector<8x1xf32>
    %748 = arith.mulf %741, %747 : vector<8x1xf32>
    %cst_220 = arith.constant 2.000000e+00 : f32
    %749 = vector.broadcast %cst_220 : f32 to vector<8x1xf32>
    %750 = arith.subf %749, %748 : vector<8x1xf32>
    %751 = arith.mulf %747, %750 : vector<8x1xf32>
    %752 = vector.broadcast %751 : vector<8x1xf32> to vector<8x32xf32>
    %753 = arith.mulf %746, %752 : vector<8x32xf32>
    %754 = tpu.concatenate %727, %753 in 1 : vector<8x32xf32>, vector<8x32xf32> -> vector<8x64xf32>
    %c0_221 = arith.constant 0 : index
    %c0_222 = arith.constant 0 : index
    %755 = vector.load %arg11[%c0_221, %c0_222] : memref<64x3xf32, #tpu.memory_space<vmem>>, vector<64x3xf32>
    %cst_223 = arith.constant dense<0.000000e+00> : vector<8x3xf32>
    %756 = tpu.matmul %754, %755, %cst_223 {dimension_numbers = #tpu.dot_dimension_numbers<[1], [0], [0], [1], [0, 0, 1, 1], [], []>} : vector<8x64xf32>, vector<64x3xf32>, vector<8x3xf32> -> vector<8x3xf32>
    %c0_224 = arith.constant 0 : index
    %c0_225 = arith.constant 0 : index
    %757 = vector.load %arg12[%c0_224, %c0_225] : memref<1x3xf32, #tpu.memory_space<vmem>>, vector<1x3xf32>
    %758 = vector.broadcast %757 : vector<1x3xf32> to vector<8x3xf32>
    %759 = arith.addf %756, %758 : vector<8x3xf32>
    %c0_226 = arith.constant 0 : index
    %c0_227 = arith.constant 0 : index
    %760 = vector.load %arg13[%c0_226, %c0_227] : memref<8x3xf32, #tpu.memory_space<vmem>>, vector<8x3xf32>
    tpu.vector_store %arg13[%c0_226, %c0_227], %759 {strides = array<i32>} : memref<8x3xf32, #tpu.memory_space<vmem>>, vector<8x3xf32>,
    return
  }
}

</mosaic_0001>

<llo_original>
// kernel: tpu_custom_call.1
$region0: #{tpu_custom_call.1}
  #allocation0 [shape = 'u32[]', space=smem, size = 0x4, offset = 0x4, fixed_abs, tag = 'smem constant byte address 0x4 - core index']
  #allocation1 [shape = 'u32[72,128]{1,0:T(1,128)}', space=vmem, size = 0x9000, scoped, tag = 'internal scratch']
  #allocation2 [shape = 'f32[64,128]{1,0:T(8,128)}', space=vmem, size = 0x8000, scoped, tag = 'scratch operand']
  %s0 = inlined_call_operand.vmem [shape: f32[64,10], index: 0, kind: input, shape index: {}]
  %s1 = inlined_call_operand.vmem [shape: f32[10,32], index: 1, kind: input, shape index: {}]
  %s2 = inlined_call_operand.vmem [shape: f32[1,32], index: 2, kind: input, shape index: {}]
  %s3 = inlined_call_operand.vmem [shape: f32[32,128], index: 3, kind: input, shape index: {}]
  %s4 = inlined_call_operand.vmem [shape: f32[32,128], index: 4, kind: input, shape index: {}]
  %s5 = inlined_call_operand.vmem [shape: f32[1,128], index: 5, kind: input, shape index: {}]
  %s6 = inlined_call_operand.vmem [shape: f32[64,128], index: 6, kind: input, shape index: {}]
  %s7 = inlined_call_operand.vmem [shape: f32[1,128], index: 7, kind: input, shape index: {}]
  %s8 = inlined_call_operand.vmem [shape: f32[32,16], index: 8, kind: input, shape index: {}]
  %s9 = inlined_call_operand.vmem [shape: f32[1,16], index: 9, kind: input, shape index: {}]
  %s10 = inlined_call_operand.vmem [shape: f32[1,16], index: 10, kind: input, shape index: {}]
  %s11 = inlined_call_operand.vmem [shape: f32[64,3], index: 11, kind: input, shape index: {}]
  %s12 = inlined_call_operand.vmem [shape: f32[1,3], index: 12, kind: input, shape index: {}]
  %s13 = inlined_call_operand.vmem [shape: f32[8,3], index: 13, kind: output, shape index: {}]
  %s14 = sld [smem:[#allocation0]]
  $region62: #{tpu_custom_call.1} parent=0
    _
  %s16 = ssub.s32 1, %s14
  %s17 = scalar_select 0, %s16, %s14
  // Predicated region
  $region2: #{tpu_custom_call.1} parent=0 // pred_check
    _
  $region3: #{tpu_custom_call.1} parent=0 // pred_check_branch
    %19 = sbr.rel (0) target = $region5
  $region4: #{tpu_custom_call.1} parent=0 // pred_region
    _
  $region5: #{tpu_custom_call.1} parent=0 // pred_fallthru
    _
  // Predicated region
  $region6: #{tpu_custom_call.1} parent=0 // pred_check
    _
  $region7: #{tpu_custom_call.1} parent=0 // pred_check_branch
    %21 = sbr.rel (0) target = $region9
  $region8: #{tpu_custom_call.1} parent=0 // pred_region
    _
  $region9: #{tpu_custom_call.1} parent=0 // pred_fallthru
    _
  // Predicated region
  $region10: #{tpu_custom_call.1} parent=0 // pred_check
    _
  $region11: #{tpu_custom_call.1} parent=0 // pred_check_branch
    %23 = sbr.rel (0) target = $region13
  $region12: #{tpu_custom_call.1} parent=0 // pred_region
    _
  $region13: #{tpu_custom_call.1} parent=0 // pred_fallthru
    _
  // Predicated region
  $region14: #{tpu_custom_call.1} parent=0 // pred_check
    _
  $region15: #{tpu_custom_call.1} parent=0 // pred_check_branch
    %25 = sbr.rel (0) target = $region17
  $region16: #{tpu_custom_call.1} parent=0 // pred_region
    _
  $region17: #{tpu_custom_call.1} parent=0 // pred_fallthru
    _
  // Predicated region
  $region18: #{tpu_custom_call.1} parent=0 // pred_check
    _
  $region19: #{tpu_custom_call.1} parent=0 // pred_check_branch
    %27 = sbr.rel (0) target = $region21
  $region20: #{tpu_custom_call.1} parent=0 // pred_region
    _
  $region21: #{tpu_custom_call.1} parent=0 // pred_fallthru
    _
  // Predicated region
  $region22: #{tpu_custom_call.1} parent=0 // pred_check
    _
  $region23: #{tpu_custom_call.1} parent=0 // pred_check_branch
    %29 = sbr.rel (0) target = $region25
  $region24: #{tpu_custom_call.1} parent=0 // pred_region
    _
  $region25: #{tpu_custom_call.1} parent=0 // pred_fallthru
    _
  // Predicated region
  $region26: #{tpu_custom_call.1} parent=0 // pred_check
    _
  $region27: #{tpu_custom_call.1} parent=0 // pred_check_branch
    %31 = sbr.rel (0) target = $region29
  $region28: #{tpu_custom_call.1} parent=0 // pred_region
    _
  $region29: #{tpu_custom_call.1} parent=0 // pred_fallthru
    _
  // Predicated region
  $region30: #{tpu_custom_call.1} parent=0 // pred_check
    _
  $region31: #{tpu_custom_call.1} parent=0 // pred_check_branch
    %33 = sbr.rel (0) target = $region33
  $region32: #{tpu_custom_call.1} parent=0 // pred_region
    _
  $region33: #{tpu_custom_call.1} parent=0 // pred_fallthru
    _
  // Predicated region
  $region34: #{tpu_custom_call.1} parent=0 // pred_check
    _
  $region35: #{tpu_custom_call.1} parent=0 // pred_check_branch
    %35 = sbr.rel (0) target = $region37
  $region36: #{tpu_custom_call.1} parent=0 // pred_region
    _
  $region37: #{tpu_custom_call.1} parent=0 // pred_fallthru
    _
  // Predicated region
  $region38: #{tpu_custom_call.1} parent=0 // pred_check
    _
  $region39: #{tpu_custom_call.1} parent=0 // pred_check_branch
    %37 = sbr.rel (0) target = $region41
  $region40: #{tpu_custom_call.1} parent=0 // pred_region
    _
  $region41: #{tpu_custom_call.1} parent=0 // pred_fallthru
    _
  // Predicated region
  $region42: #{tpu_custom_call.1} parent=0 // pred_check
    _
  $region43: #{tpu_custom_call.1} parent=0 // pred_check_branch
    %39 = sbr.rel (0) target = $region45
  $region44: #{tpu_custom_call.1} parent=0 // pred_region
    _
  $region45: #{tpu_custom_call.1} parent=0 // pred_fallthru
    _
  // Predicated region
  $region46: #{tpu_custom_call.1} parent=0 // pred_check
    _
  $region47: #{tpu_custom_call.1} parent=0 // pred_check_branch
    %41 = sbr.rel (0) target = $region49
  $region48: #{tpu_custom_call.1} parent=0 // pred_region
    _
  $region49: #{tpu_custom_call.1} parent=0 // pred_fallthru
    _
  // Predicated region
  $region50: #{tpu_custom_call.1} parent=0 // pred_check
    _
  $region51: #{tpu_custom_call.1} parent=0 // pred_check_branch
    %43 = sbr.rel (0) target = $region53
  $region52: #{tpu_custom_call.1} parent=0 // pred_region
    _
  $region53: #{tpu_custom_call.1} parent=0 // pred_fallthru
    _
  %v44 = vld [vmem:[%s0] sm:$0xff]
  %v45 = vld [vmem:[%s0 + $0x8] sm:$0xff]
  %v46 = vld [vmem:[%s0 + $0x10] sm:$0xff]
  %v47 = vld [vmem:[%s0 + $0x18] sm:$0xff]
  %v48 = vld [vmem:[%s0 + $0x20] sm:$0xff]
  %v49 = vld [vmem:[%s0 + $0x28] sm:$0xff]
  %v50 = vld [vmem:[%s0 + $0x30] sm:$0xff]
  %v51 = vld [vmem:[%s0 + $0x38] sm:$0xff]
  %v52 = vld [vmem:[%s1] sm:$0xff]
  %v53 = vld [vmem:[%s1 + $0x8] sm:$0x3]
  %v54 = vld [vmem:[%s2] sm:$0x1]
  %v56 = vperm.slane %v54, 0
  %vm58 = vcmask 80896
  %v60 = vsel %vm58, %v44, 0
  %v63 = vsel %vm58, %v45, 0
  %v66 = vsel %vm58, %v46, 0
  %v69 = vsel %vm58, %v47, 0
  %v72 = vsel %vm58, %v48, 0
  %v75 = vsel %vm58, %v49, 0
  %v78 = vsel %vm58, %v50, 0
  %v81 = vsel %vm58, %v51, 0
  %vm83 = vcmask 1041408
  %v85 = vsel %vm83, %v53, 0
  %87 = vmatpush.msra.mxu0 0.0
  %88 = vmatpush.msra.mxu0 0.0
  %89 = vmatpush.msra.mxu0 0.0
  %90 = vmatpush.msra.mxu0 0.0
  %91 = vmatpush.msra.mxu0 0.0
  %92 = vmatpush.msra.mxu0 0.0
  %93 = vmatpush.msra.mxu0 0.0
  %94 = vmatpush.msra.mxu0 0.0
  %95 = vmatpush.msra.mxu0 0.0
  %96 = vmatpush.msra.mxu0 0.0
  %97 = vmatpush.msra.mxu0 0.0
  %98 = vmatpush.msra.mxu0 0.0
  %99 = vmatpush.msra.mxu0 0.0
  %100 = vmatpush.msra.mxu0 0.0
  %101 = vmatpush.msra.mxu0 %v85
  %102 = vmatpush.msra.mxu0 %v52
  %103 = vmatmul.f32.gmra.mxu0 %v60
  %v104 = vpop.f32.mrf.mxu0
  %v105 = vadd.f32 %v56, %v104
  %106 = vmatmul.f32.gmra.mxu0 %v63
  %v107 = vpop.f32.mrf.mxu0
  %v108 = vadd.f32 %v56, %v107
  %109 = vmatmul.f32.gmra.mxu0 %v66
  %v110 = vpop.f32.mrf.mxu0
  %v111 = vadd.f32 %v56, %v110
  %112 = vmatmul.f32.gmra.mxu0 %v69
  %v113 = vpop.f32.mrf.mxu0
  %v114 = vadd.f32 %v56, %v113
  %115 = vmatmul.f32.gmra.mxu0 %v72
  %v116 = vpop.f32.mrf.mxu0
  %v117 = vadd.f32 %v56, %v116
  %118 = vmatmul.f32.gmra.mxu0 %v75
  %v119 = vpop.f32.mrf.mxu0
  %v120 = vadd.f32 %v56, %v119
  %121 = vmatmul.f32.gmra.mxu0 %v78
  %v122 = vpop.f32.mrf.mxu0
  %v123 = vadd.f32 %v56, %v122
  %124 = vmatmul.f32.gmra.mxu0 %v81
  %v125 = vpop.f32.mrf.mxu0
  %v126 = vadd.f32 %v56, %v125
  %127 = vdwg.mxu0
  %v128 = vtanh.pop %v105
  %v129 = vtanh.pop %v108
  %v130 = vtanh.pop %v111
  %v131 = vtanh.pop %v114
  %v132 = vtanh.pop %v117
  %v133 = vtanh.pop %v120
  %v134 = vtanh.pop %v123
  %v135 = vtanh.pop %v126
  %v136 = vld [vmem:[%s3] sm:$0xff]
  %v137 = vld [vmem:[%s3 + $0x8] sm:$0xff]
  %v138 = vld [vmem:[%s3 + $0x10] sm:$0xff]
  %v139 = vld [vmem:[%s3 + $0x18] sm:$0xff]
  %v140 = vld [vmem:[%s5] sm:$0x1]
  %v142 = vperm.slane %v140, 0
  %vm144 = vcmask 261120
  %v146 = vsel %vm144, %v128, 0
  %v149 = vsel %vm144, %v129, 0
  %v152 = vsel %vm144, %v130, 0
  %v155 = vsel %vm144, %v131, 0
  %v158 = vsel %vm144, %v132, 0
  %v161 = vsel %vm144, %v133, 0
  %v164 = vsel %vm144, %v134, 0
  %v167 = vsel %vm144, %v135, 0
  %169 = vmatpush.msra.mxu0 0.0
  %170 = vmatpush.msra.mxu0 0.0
  %171 = vmatpush.msra.mxu0 0.0
  %172 = vmatpush.msra.mxu0 0.0
  %173 = vmatpush.msra.mxu0 0.0
  %174 = vmatpush.msra.mxu0 0.0
  %175 = vmatpush.msra.mxu0 0.0
  %176 = vmatpush.msra.mxu0 0.0
  %177 = vmatpush.msra.mxu0 0.0
  %178 = vmatpush.msra.mxu0 0.0
  %179 = vmatpush.msra.mxu0 0.0
  %180 = vmatpush.msra.mxu0 0.0
  %181 = vmatpush.msra.mxu0 %v139
  %182 = vmatpush.msra.mxu0 %v138
  %183 = vmatpush.msra.mxu0 %v137
  %184 = vmatpush.msra.mxu0 %v136
  %185 = vmatmul.f32.gmra.mxu0 %v146
  %v186 = vpop.f32.mrf.mxu0
  %v187 = vadd.f32 %v142, %v186
  %188 = vmatmul.f32.gmra.mxu0 %v149
  %v189 = vpop.f32.mrf.mxu0
  %v190 = vadd.f32 %v142, %v189
  %191 = vmatmul.f32.gmra.mxu0 %v152
  %v192 = vpop.f32.mrf.mxu0
  %v193 = vadd.f32 %v142, %v192
  %194 = vmatmul.f32.gmra.mxu0 %v155
  %v195 = vpop.f32.mrf.mxu0
  %v196 = vadd.f32 %v142, %v195
  %197 = vmatmul.f32.gmra.mxu0 %v158
  %v198 = vpop.f32.mrf.mxu0
  %v199 = vadd.f32 %v142, %v198
  %200 = vmatmul.f32.gmra.mxu0 %v161
  %v201 = vpop.f32.mrf.mxu0
  %v202 = vadd.f32 %v142, %v201
  %203 = vmatmul.f32.gmra.mxu0 %v164
  %v204 = vpop.f32.mrf.mxu0
  %v205 = vadd.f32 %v142, %v204
  %206 = vmatmul.f32.gmra.mxu0 %v167
  %v207 = vpop.f32.mrf.mxu0
  %v208 = vadd.f32 %v142, %v207
  %209 = vdwg.mxu0
  %210 = vst [vmem:[#allocation2] sm:$0xff] %v187
  %211 = vst [vmem:[#allocation2 + $0x8] sm:$0xff] %v190
  %212 = vst [vmem:[#allocation2 + $0x10] sm:$0xff] %v193
  %213 = vst [vmem:[#allocation2 + $0x18] sm:$0xff] %v196
  %214 = vst [vmem:[#allocation2 + $0x20] sm:$0xff] %v199
  %215 = vst [vmem:[#allocation2 + $0x28] sm:$0xff] %v202
  %216 = vst [vmem:[#allocation2 + $0x30] sm:$0xff] %v205
  %217 = vst [vmem:[#allocation2 + $0x38] sm:$0xff] %v208
  %v218 = vld [vmem:[%s4] sm:$0xff]
  %v219 = vld [vmem:[%s4 + $0x8] sm:$0xff]
  %v220 = vld [vmem:[%s4 + $0x10] sm:$0xff]
  %v221 = vld [vmem:[%s4 + $0x18] sm:$0xff]
  %v222 = vld [vmem:[%s6] sm:$0xff]
  %v223 = vld [vmem:[%s6 + $0x8] sm:$0xff]
  %v224 = vld [vmem:[%s6 + $0x10] sm:$0xff]
  %v225 = vld [vmem:[%s6 + $0x18] sm:$0xff]
  %v226 = vld [vmem:[%s6 + $0x20] sm:$0xff]
  %v227 = vld [vmem:[%s6 + $0x28] sm:$0xff]
  %v228 = vld [vmem:[%s6 + $0x30] sm:$0xff]
  %v229 = vld [vmem:[%s6 + $0x38] sm:$0xff]
  %v230 = vld [vmem:[%s7] sm:$0x1]
  %v232 = vperm.slane %v230, 0
  %v234 = vld [vmem:[%s8] sm:$0xff]
  %v235 = vld [vmem:[%s8 + $0x8] sm:$0xff]
  %v236 = vld [vmem:[%s8 + $0x10] sm:$0xff]
  %v237 = vld [vmem:[%s8 + $0x18] sm:$0xff]
  %v238 = vld [vmem:[%s9] sm:$0x1]
  %v240 = vperm.slane %v238, 0
  %v242 = vld [vmem:[%s10] sm:$0x1]
  %v243 = vld [vmem:[#allocation2] sm:$0xff]
  %v245 = vsel %vm144, 0.0, 0
  %247 = vmatpush.msra.mxu0 0.0
  %248 = vmatpush.msra.mxu0 0.0
  %249 = vmatpush.msra.mxu0 0.0
  %250 = vmatpush.msra.mxu0 0.0
  %251 = vmatpush.msra.mxu0 0.0
  %252 = vmatpush.msra.mxu0 0.0
  %253 = vmatpush.msra.mxu0 0.0
  %254 = vmatpush.msra.mxu0 0.0
  %255 = vmatpush.msra.mxu0 0.0
  %256 = vmatpush.msra.mxu0 0.0
  %257 = vmatpush.msra.mxu0 0.0
  %258 = vmatpush.msra.mxu0 0.0
  %259 = vmatpush.msra.mxu0 %v221
  %260 = vmatpush.msra.mxu0 %v220
  %261 = vmatpush.msra.mxu0 %v219
  %262 = vmatpush.msra.mxu0 %v218
  %263 = vmatmul.f32.gmra.mxu0 %v245
  %v264 = vpop.f32.mrf.mxu0
  %v265 = vadd.f32 0.0, %v264
  %266 = vdwg.mxu0
  %v267 = vadd.f32 %v243, %v265
  %v268 = vmul.f32 %v267, 0.5
  %v269 = vtanh.pop %v268
  %v270 = vmul.f32 %v269, 0.5
  %v271 = vadd.f32 %v270, 0.5
  %v272 = vtanh.pop %v267
  %v273 = vmul.f32 %v271, 0.0
  %275 = vrot.lane.b32.xlu0 %v272, 64
  %v276 = vpop.permute.xlu0 %275
  %v278 = vmul.f32 %v271, %v276
  %280 = vrot.lane.b32.xlu0 %v278, 32
  %v281 = vpop.permute.xlu0 %280
  %v283 = vadd.f32 %v273, %v281
  %v284 = vtanh.pop %v283
  %286 = vrot.lane.b32.xlu0 %v284, 64
  %v287 = vpop.permute.xlu0 %286
  %v289 = vmul.f32 %v271, %v287
  %291 = vrot.lane.b32.xlu0 %v289, 32
  %v292 = vpop.permute.xlu0 %291
  %v294 = vsel %vm144, %v292, 0.0
  %vm295 = vcmask 523264
  %v297 = vsel %vm295, %v294, 0
  %299 = vmatpush.msra.mxu0 0.0
  %300 = vmatpush.msra.mxu0 0.0
  %301 = vmatpush.msra.mxu0 0.0
  %302 = vmatpush.msra.mxu0 0.0
  %303 = vmatpush.msra.mxu0 0.0
  %304 = vmatpush.msra.mxu0 0.0
  %305 = vmatpush.msra.mxu0 0.0
  %306 = vmatpush.msra.mxu0 0.0
  %307 = vmatpush.msra.mxu0 %v229
  %308 = vmatpush.msra.mxu0 %v228
  %309 = vmatpush.msra.mxu0 %v227
  %310 = vmatpush.msra.mxu0 %v226
  %311 = vmatpush.msra.mxu0 %v225
  %312 = vmatpush.msra.mxu0 %v224
  %313 = vmatpush.msra.mxu0 %v223
  %314 = vmatpush.msra.mxu0 %v222
  %315 = vmatmul.f32.gmra.mxu0 %v297
  %v316 = vpop.f32.mrf.mxu0
  %v317 = vadd.f32 %v232, %v316
  %318 = vdwg.mxu0
  %v319 = vmul.f32 %v317, 0.5
  %v320 = vtanh.pop %v319
  %v321 = vmul.f32 %v320, 0.5
  %v322 = vadd.f32 %v321, 0.5
  %v323 = vtanh.pop %v317
  %v324 = vmul.f32 %v322, 0.0
  %326 = vrot.lane.b32.xlu0 %v323, 64
  %v327 = vpop.permute.xlu0 %326
  %v329 = vmul.f32 %v322, %v327
  %331 = vrot.lane.b32.xlu0 %v329, 32
  %v332 = vpop.permute.xlu0 %331
  %v334 = vadd.f32 %v324, %v332
  %v335 = vtanh.pop %v334
  %337 = vrot.lane.b32.xlu0 %v335, 64
  %v338 = vpop.permute.xlu0 %337
  %v340 = vmul.f32 %v322, %v338
  %342 = vrot.lane.b32.xlu0 %v340, 32
  %v343 = vpop.permute.xlu0 %342
  %v344 = vsel %vm144, %v343, 0
  %346 = vmatpush.msra.mxu0 0.0
  %347 = vmatpush.msra.mxu0 0.0
  %348 = vmatpush.msra.mxu0 0.0
  %349 = vmatpush.msra.mxu0 0.0
  %350 = vmatpush.msra.mxu0 0.0
  %351 = vmatpush.msra.mxu0 0.0
  %352 = vmatpush.msra.mxu0 0.0
  %353 = vmatpush.msra.mxu0 0.0
  %354 = vmatpush.msra.mxu0 0.0
  %355 = vmatpush.msra.mxu0 0.0
  %356 = vmatpush.msra.mxu0 0.0
  %357 = vmatpush.msra.mxu0 0.0
  %358 = vmatpush.msra.mxu0 %v237
  %359 = vmatpush.msra.mxu0 %v236
  %360 = vmatpush.msra.mxu0 %v235
  %361 = vmatpush.msra.mxu0 %v234
  %362 = vmatmul.f32.gmra.mxu0 %v344
  %v363 = vpop.f32.mrf.mxu0
  %v364 = vadd.f32 %v240, %v363
  %365 = vdwg.mxu0
  %v366 = vtanh.pop %v364
  %v368 = vperm.slane %v242, 0
  %v370 = vmul.f32 %v366, %v368
  %vm371 = vcmask 130048
  %v372 = vsel %vm371, %v370, 0.0
  %373 = vadd.xlane.f32.xlu0 %v372
  %v374 = vpop.xlane.xlu0 %373
  %v375 = vsub.f32 -inf, %v374
  %v376 = vmul.f32 %v375, 1.442695
  %v377 = vpow.pop %v376
  %v378 = vsub.f32 %v374, %v374
  %v379 = vmul.f32 %v378, 1.442695
  %v380 = vpow.pop %v379
  %v381 = vmul.f32 %v377, 0.0
  %v382 = vadd.f32 %v381, %v380
  %v383 = vmul.f32 %v380, %v340
  %v384 = vadd.f32 %v381, %v383
  %s385 = scalar_lea.vmem [#allocation2], 8
  %v386 = vld [vmem:[%s385] sm:$0xff]
  %v387 = vsel %vm144, %v292, 0
  %389 = vmatpush.msra.mxu0 0.0
  %390 = vmatpush.msra.mxu0 0.0
  %391 = vmatpush.msra.mxu0 0.0
  %392 = vmatpush.msra.mxu0 0.0
  %393 = vmatpush.msra.mxu0 0.0
  %394 = vmatpush.msra.mxu0 0.0
  %395 = vmatpush.msra.mxu0 0.0
  %396 = vmatpush.msra.mxu0 0.0
  %397 = vmatpush.msra.mxu0 0.0
  %398 = vmatpush.msra.mxu0 0.0
  %399 = vmatpush.msra.mxu0 0.0
  %400 = vmatpush.msra.mxu0 0.0
  %401 = vmatpush.msra.mxu0 %v221
  %402 = vmatpush.msra.mxu0 %v220
  %403 = vmatpush.msra.mxu0 %v219
  %404 = vmatpush.msra.mxu0 %v218
  %405 = vmatmul.f32.gmra.mxu0 %v387
  %v406 = vpop.f32.mrf.mxu0
  %v407 = vadd.f32 0.0, %v406
  %408 = vdwg.mxu0
  %v409 = vadd.f32 %v386, %v407
  %v410 = vmul.f32 %v409, 0.5
  %v411 = vtanh.pop %v410
  %v412 = vmul.f32 %v411, 0.5
  %v413 = vadd.f32 %v412, 0.5
  %v414 = vtanh.pop %v409
  %v415 = vmul.f32 %v413, %v283
  %417 = vrot.lane.b32.xlu0 %v414, 64
  %v418 = vpop.permute.xlu0 %417
  %v420 = vmul.f32 %v413, %v418
  %422 = vrot.lane.b32.xlu0 %v420, 32
  %v423 = vpop.permute.xlu0 %422
  %v425 = vadd.f32 %v415, %v423
  %v426 = vtanh.pop %v425
  %428 = vrot.lane.b32.xlu0 %v426, 64
  %v429 = vpop.permute.xlu0 %428
  %v431 = vmul.f32 %v413, %v429
  %433 = vrot.lane.b32.xlu0 %v431, 32
  %v434 = vpop.permute.xlu0 %433
  %436 = vrot.lane.b32.xlu0 %v340, 64
  %v437 = vpop.permute.xlu0 %436
  %v439 = vsel %vm144, %v434, %v437
  %v441 = vsel %vm295, %v439, 0
  %443 = vmatpush.msra.mxu0 0.0
  %444 = vmatpush.msra.mxu0 0.0
  %445 = vmatpush.msra.mxu0 0.0
  %446 = vmatpush.msra.mxu0 0.0
  %447 = vmatpush.msra.mxu0 0.0
  %448 = vmatpush.msra.mxu0 0.0
  %449 = vmatpush.msra.mxu0 0.0
  %450 = vmatpush.msra.mxu0 0.0
  %451 = vmatpush.msra.mxu0 %v229
  %452 = vmatpush.msra.mxu0 %v228
  %453 = vmatpush.msra.mxu0 %v227
  %454 = vmatpush.msra.mxu0 %v226
  %455 = vmatpush.msra.mxu0 %v225
  %456 = vmatpush.msra.mxu0 %v224
  %457 = vmatpush.msra.mxu0 %v223
  %458 = vmatpush.msra.mxu0 %v222
  %459 = vmatmul.f32.gmra.mxu0 %v441
  %v460 = vpop.f32.mrf.mxu0
  %v461 = vadd.f32 %v232, %v460
  %462 = vdwg.mxu0
  %v463 = vmul.f32 %v461, 0.5
  %v464 = vtanh.pop %v463
  %v465 = vmul.f32 %v464, 0.5
  %v466 = vadd.f32 %v465, 0.5
  %v467 = vtanh.pop %v461
  %v468 = vmul.f32 %v466, %v334
  %470 = vrot.lane.b32.xlu0 %v467, 64
  %v471 = vpop.permute.xlu0 %470
  %v473 = vmul.f32 %v466, %v471
  %475 = vrot.lane.b32.xlu0 %v473, 32
  %v476 = vpop.permute.xlu0 %475
  %v478 = vadd.f32 %v468, %v476
  %v479 = vtanh.pop %v478
  %481 = vrot.lane.b32.xlu0 %v479, 64
  %v482 = vpop.permute.xlu0 %481
  %v484 = vmul.f32 %v466, %v482
  %486 = vrot.lane.b32.xlu0 %v484, 32
  %v487 = vpop.permute.xlu0 %486
  %v488 = vsel %vm144, %v487, 0
  %490 = vmatpush.msra.mxu0 0.0
  %491 = vmatpush.msra.mxu0 0.0
  %492 = vmatpush.msra.mxu0 0.0
  %493 = vmatpush.msra.mxu0 0.0
  %494 = vmatpush.msra.mxu0 0.0
  %495 = vmatpush.msra.mxu0 0.0
  %496 = vmatpush.msra.mxu0 0.0
  %497 = vmatpush.msra.mxu0 0.0
  %498 = vmatpush.msra.mxu0 0.0
  %499 = vmatpush.msra.mxu0 0.0
  %500 = vmatpush.msra.mxu0 0.0
  %501 = vmatpush.msra.mxu0 0.0
  %502 = vmatpush.msra.mxu0 %v237
  %503 = vmatpush.msra.mxu0 %v236
  %504 = vmatpush.msra.mxu0 %v235
  %505 = vmatpush.msra.mxu0 %v234
  %506 = vmatmul.f32.gmra.mxu0 %v488
  %v507 = vpop.f32.mrf.mxu0
  %v508 = vadd.f32 %v240, %v507
  %509 = vdwg.mxu0
  %v510 = vtanh.pop %v508
  %v511 = vmul.f32 %v510, %v368
  %v512 = vsel %vm371, %v511, 0.0
  %513 = vadd.xlane.f32.xlu0 %v512
  %v514 = vpop.xlane.xlu0 %513
  %v515 = vmax.f32 %v374, %v514
  %v516 = vsub.f32 %v374, %v515
  %v517 = vmul.f32 %v516, 1.442695
  %v518 = vpow.pop %v517
  %v519 = vsub.f32 %v514, %v515
  %v520 = vmul.f32 %v519, 1.442695
  %v521 = vpow.pop %v520
  %v522 = vmul.f32 %v382, %v518
  %v523 = vadd.f32 %v522, %v521
  %v524 = vmul.f32 %v384, %v518
  %v525 = vmul.f32 %v521, %v484
  %v526 = vadd.f32 %v524, %v525
  %s527 = scalar_lea.vmem [#allocation2], 16
  %v528 = vld [vmem:[%s527] sm:$0xff]
  %v529 = vsel %vm144, %v434, 0
  %531 = vmatpush.msra.mxu0 0.0
  %532 = vmatpush.msra.mxu0 0.0
  %533 = vmatpush.msra.mxu0 0.0
  %534 = vmatpush.msra.mxu0 0.0
  %535 = vmatpush.msra.mxu0 0.0
  %536 = vmatpush.msra.mxu0 0.0
  %537 = vmatpush.msra.mxu0 0.0
  %538 = vmatpush.msra.mxu0 0.0
  %539 = vmatpush.msra.mxu0 0.0
  %540 = vmatpush.msra.mxu0 0.0
  %541 = vmatpush.msra.mxu0 0.0
  %542 = vmatpush.msra.mxu0 0.0
  %543 = vmatpush.msra.mxu0 %v221
  %544 = vmatpush.msra.mxu0 %v220
  %545 = vmatpush.msra.mxu0 %v219
  %546 = vmatpush.msra.mxu0 %v218
  %547 = vmatmul.f32.gmra.mxu0 %v529
  %v548 = vpop.f32.mrf.mxu0
  %v549 = vadd.f32 0.0, %v548
  %550 = vdwg.mxu0
  %v551 = vadd.f32 %v528, %v549
  %v552 = vmul.f32 %v551, 0.5
  %v553 = vtanh.pop %v552
  %v554 = vmul.f32 %v553, 0.5
  %v555 = vadd.f32 %v554, 0.5
  %v556 = vtanh.pop %v551
  %v557 = vmul.f32 %v555, %v425
  %559 = vrot.lane.b32.xlu0 %v556, 64
  %v560 = vpop.permute.xlu0 %559
  %v562 = vmul.f32 %v555, %v560
  %564 = vrot.lane.b32.xlu0 %v562, 32
  %v565 = vpop.permute.xlu0 %564
  %v567 = vadd.f32 %v557, %v565
  %v568 = vtanh.pop %v567
  %570 = vrot.lane.b32.xlu0 %v568, 64
  %v571 = vpop.permute.xlu0 %570
  %v573 = vmul.f32 %v555, %v571
  %575 = vrot.lane.b32.xlu0 %v573, 32
  %v576 = vpop.permute.xlu0 %575
  %578 = vrot.lane.b32.xlu0 %v484, 64
  %v579 = vpop.permute.xlu0 %578
  %v581 = vsel %vm144, %v576, %v579
  %v583 = vsel %vm295, %v581, 0
  %585 = vmatpush.msra.mxu0 0.0
  %586 = vmatpush.msra.mxu0 0.0
  %587 = vmatpush.msra.mxu0 0.0
  %588 = vmatpush.msra.mxu0 0.0
  %589 = vmatpush.msra.mxu0 0.0
  %590 = vmatpush.msra.mxu0 0.0
  %591 = vmatpush.msra.mxu0 0.0
  %592 = vmatpush.msra.mxu0 0.0
  %593 = vmatpush.msra.mxu0 %v229
  %594 = vmatpush.msra.mxu0 %v228
  %595 = vmatpush.msra.mxu0 %v227
  %596 = vmatpush.msra.mxu0 %v226
  %597 = vmatpush.msra.mxu0 %v225
  %598 = vmatpush.msra.mxu0 %v224
  %599 = vmatpush.msra.mxu0 %v223
  %600 = vmatpush.msra.mxu0 %v222
  %601 = vmatmul.f32.gmra.mxu0 %v583
  %v602 = vpop.f32.mrf.mxu0
  %v603 = vadd.f32 %v232, %v602
  %604 = vdwg.mxu0
  %v605 = vmul.f32 %v603, 0.5
  %v606 = vtanh.pop %v605
  %v607 = vmul.f32 %v606, 0.5
  %v608 = vadd.f32 %v607, 0.5
  %v609 = vtanh.pop %v603
  %v610 = vmul.f32 %v608, %v478
  %612 = vrot.lane.b32.xlu0 %v609, 64
  %v613 = vpop.permute.xlu0 %612
  %v615 = vmul.f32 %v608, %v613
  %617 = vrot.lane.b32.xlu0 %v615, 32
  %v618 = vpop.permute.xlu0 %617
  %v620 = vadd.f32 %v610, %v618
  %v621 = vtanh.pop %v620
  %623 = vrot.lane.b32.xlu0 %v621, 64
  %v624 = vpop.permute.xlu0 %623
  %v626 = vmul.f32 %v608, %v624
  %628 = vrot.lane.b32.xlu0 %v626, 32
  %v629 = vpop.permute.xlu0 %628
  %v630 = vsel %vm144, %v629, 0
  %632 = vmatpush.msra.mxu0 0.0
  %633 = vmatpush.msra.mxu0 0.0
  %634 = vmatpush.msra.mxu0 0.0
  %635 = vmatpush.msra.mxu0 0.0
  %636 = vmatpush.msra.mxu0 0.0
  %637 = vmatpush.msra.mxu0 0.0
  %638 = vmatpush.msra.mxu0 0.0
  %639 = vmatpush.msra.mxu0 0.0
  %640 = vmatpush.msra.mxu0 0.0
  %641 = vmatpush.msra.mxu0 0.0
  %642 = vmatpush.msra.mxu0 0.0
  %643 = vmatpush.msra.mxu0 0.0
  %644 = vmatpush.msra.mxu0 %v237
  %645 = vmatpush.msra.mxu0 %v236
  %646 = vmatpush.msra.mxu0 %v235
  %647 = vmatpush.msra.mxu0 %v234
  %648 = vmatmul.f32.gmra.mxu0 %v630
  %v649 = vpop.f32.mrf.mxu0
  %v650 = vadd.f32 %v240, %v649
  %651 = vdwg.mxu0
  %v652 = vtanh.pop %v650
  %v653 = vmul.f32 %v652, %v368
  %v654 = vsel %vm371, %v653, 0.0
  %655 = vadd.xlane.f32.xlu0 %v654
  %v656 = vpop.xlane.xlu0 %655
  %v657 = vmax.f32 %v515, %v656
  %v658 = vsub.f32 %v515, %v657
  %v659 = vmul.f32 %v658, 1.442695
  %v660 = vpow.pop %v659
  %v661 = vsub.f32 %v656, %v657
  %v662 = vmul.f32 %v661, 1.442695
  %v663 = vpow.pop %v662
  %v664 = vmul.f32 %v523, %v660
  %v665 = vadd.f32 %v664, %v663
  %v666 = vmul.f32 %v526, %v660
  %v667 = vmul.f32 %v663, %v626
  %v668 = vadd.f32 %v666, %v667
  %s669 = scalar_lea.vmem [#allocation2], 24
  %v670 = vld [vmem:[%s669] sm:$0xff]
  %v671 = vsel %vm144, %v576, 0
  %673 = vmatpush.msra.mxu0 0.0
  %674 = vmatpush.msra.mxu0 0.0
  %675 = vmatpush.msra.mxu0 0.0
  %676 = vmatpush.msra.mxu0 0.0
  %677 = vmatpush.msra.mxu0 0.0
  %678 = vmatpush.msra.mxu0 0.0
  %679 = vmatpush.msra.mxu0 0.0
  %680 = vmatpush.msra.mxu0 0.0
  %681 = vmatpush.msra.mxu0 0.0
  %682 = vmatpush.msra.mxu0 0.0
  %683 = vmatpush.msra.mxu0 0.0
  %684 = vmatpush.msra.mxu0 0.0
  %685 = vmatpush.msra.mxu0 %v221
  %686 = vmatpush.msra.mxu0 %v220
  %687 = vmatpush.msra.mxu0 %v219
  %688 = vmatpush.msra.mxu0 %v218
  %689 = vmatmul.f32.gmra.mxu0 %v671
  %v690 = vpop.f32.mrf.mxu0
  %v691 = vadd.f32 0.0, %v690
  %692 = vdwg.mxu0
  %v693 = vadd.f32 %v670, %v691
  %v694 = vmul.f32 %v693, 0.5
  %v695 = vtanh.pop %v694
  %v696 = vmul.f32 %v695, 0.5
  %v697 = vadd.f32 %v696, 0.5
  %v698 = vtanh.pop %v693
  %v699 = vmul.f32 %v697, %v567
  %701 = vrot.lane.b32.xlu0 %v698, 64
  %v702 = vpop.permute.xlu0 %701
  %v704 = vmul.f32 %v697, %v702
  %706 = vrot.lane.b32.xlu0 %v704, 32
  %v707 = vpop.permute.xlu0 %706
  %v709 = vadd.f32 %v699, %v707
  %v710 = vtanh.pop %v709
  %712 = vrot.lane.b32.xlu0 %v710, 64
  %v713 = vpop.permute.xlu0 %712
  %v715 = vmul.f32 %v697, %v713
  %717 = vrot.lane.b32.xlu0 %v715, 32
  %v718 = vpop.permute.xlu0 %717
  %720 = vrot.lane.b32.xlu0 %v626, 64
  %v721 = vpop.permute.xlu0 %720
  %v723 = vsel %vm144, %v718, %v721
  %v725 = vsel %vm295, %v723, 0
  %727 = vmatpush.msra.mxu0 0.0
  %728 = vmatpush.msra.mxu0 0.0
  %729 = vmatpush.msra.mxu0 0.0
  %730 = vmatpush.msra.mxu0 0.0
  %731 = vmatpush.msra.mxu0 0.0
  %732 = vmatpush.msra.mxu0 0.0
  %733 = vmatpush.msra.mxu0 0.0
  %734 = vmatpush.msra.mxu0 0.0
  %735 = vmatpush.msra.mxu0 %v229
  %736 = vmatpush.msra.mxu0 %v228
  %737 = vmatpush.msra.mxu0 %v227
  %738 = vmatpush.msra.mxu0 %v226
  %739 = vmatpush.msra.mxu0 %v225
  %740 = vmatpush.msra.mxu0 %v224
  %741 = vmatpush.msra.mxu0 %v223
  %742 = vmatpush.msra.mxu0 %v222
  %743 = vmatmul.f32.gmra.mxu0 %v725
  %v744 = vpop.f32.mrf.mxu0
  %v745 = vadd.f32 %v232, %v744
  %746 = vdwg.mxu0
  %v747 = vmul.f32 %v745, 0.5
  %v748 = vtanh.pop %v747
  %v749 = vmul.f32 %v748, 0.5
  %v750 = vadd.f32 %v749, 0.5
  %v751 = vtanh.pop %v745
  %v752 = vmul.f32 %v750, %v620
  %754 = vrot.lane.b32.xlu0 %v751, 64
  %v755 = vpop.permute.xlu0 %754
  %v757 = vmul.f32 %v750, %v755
  %759 = vrot.lane.b32.xlu0 %v757, 32
  %v760 = vpop.permute.xlu0 %759
  %v762 = vadd.f32 %v752, %v760
  %v763 = vtanh.pop %v762
  %765 = vrot.lane.b32.xlu0 %v763, 64
  %v766 = vpop.permute.xlu0 %765
  %v768 = vmul.f32 %v750, %v766
  %770 = vrot.lane.b32.xlu0 %v768, 32
  %v771 = vpop.permute.xlu0 %770
  %v772 = vsel %vm144, %v771, 0
  %774 = vmatpush.msra.mxu0 0.0
  %775 = vmatpush.msra.mxu0 0.0
  %776 = vmatpush.msra.mxu0 0.0
  %777 = vmatpush.msra.mxu0 0.0
  %778 = vmatpush.msra.mxu0 0.0
  %779 = vmatpush.msra.mxu0 0.0
  %780 = vmatpush.msra.mxu0 0.0
  %781 = vmatpush.msra.mxu0 0.0
  %782 = vmatpush.msra.mxu0 0.0
  %783 = vmatpush.msra.mxu0 0.0
  %784 = vmatpush.msra.mxu0 0.0
  %785 = vmatpush.msra.mxu0 0.0
  %786 = vmatpush.msra.mxu0 %v237
  %787 = vmatpush.msra.mxu0 %v236
  %788 = vmatpush.msra.mxu0 %v235
  %789 = vmatpush.msra.mxu0 %v234
  %790 = vmatmul.f32.gmra.mxu0 %v772
  %v791 = vpop.f32.mrf.mxu0
  %v792 = vadd.f32 %v240, %v791
  %793 = vdwg.mxu0
  %v794 = vtanh.pop %v792
  %v795 = vmul.f32 %v794, %v368
  %v796 = vsel %vm371, %v795, 0.0
  %797 = vadd.xlane.f32.xlu0 %v796
  %v798 = vpop.xlane.xlu0 %797
  %v799 = vmax.f32 %v657, %v798
  %v800 = vsub.f32 %v657, %v799
  %v801 = vmul.f32 %v800, 1.442695
  %v802 = vpow.pop %v801
  %v803 = vsub.f32 %v798, %v799
  %v804 = vmul.f32 %v803, 1.442695
  %v805 = vpow.pop %v804
  %v806 = vmul.f32 %v665, %v802
  %v807 = vadd.f32 %v806, %v805
  %v808 = vmul.f32 %v668, %v802
  %v809 = vmul.f32 %v805, %v768
  %v810 = vadd.f32 %v808, %v809
  %s811 = scalar_lea.vmem [#allocation2], 32
  %v812 = vld [vmem:[%s811] sm:$0xff]
  %v813 = vsel %vm144, %v718, 0
  %815 = vmatpush.msra.mxu0 0.0
  %816 = vmatpush.msra.mxu0 0.0
  %817 = vmatpush.msra.mxu0 0.0
  %818 = vmatpush.msra.mxu0 0.0
  %819 = vmatpush.msra.mxu0 0.0
  %820 = vmatpush.msra.mxu0 0.0
  %821 = vmatpush.msra.mxu0 0.0
  %822 = vmatpush.msra.mxu0 0.0
  %823 = vmatpush.msra.mxu0 0.0
  %824 = vmatpush.msra.mxu0 0.0
  %825 = vmatpush.msra.mxu0 0.0
  %826 = vmatpush.msra.mxu0 0.0
  %827 = vmatpush.msra.mxu0 %v221
  %828 = vmatpush.msra.mxu0 %v220
  %829 = vmatpush.msra.mxu0 %v219
  %830 = vmatpush.msra.mxu0 %v218
  %831 = vmatmul.f32.gmra.mxu0 %v813
  %v832 = vpop.f32.mrf.mxu0
  %v833 = vadd.f32 0.0, %v832
  %834 = vdwg.mxu0
  %v835 = vadd.f32 %v812, %v833
  %v836 = vmul.f32 %v835, 0.5
  %v837 = vtanh.pop %v836
  %v838 = vmul.f32 %v837, 0.5
  %v839 = vadd.f32 %v838, 0.5
  %v840 = vtanh.pop %v835
  %v841 = vmul.f32 %v839, %v709
  %843 = vrot.lane.b32.xlu0 %v840, 64
  %v844 = vpop.permute.xlu0 %843
  %v846 = vmul.f32 %v839, %v844
  %848 = vrot.lane.b32.xlu0 %v846, 32
  %v849 = vpop.permute.xlu0 %848
  %v851 = vadd.f32 %v841, %v849
  %v852 = vtanh.pop %v851
  %854 = vrot.lane.b32.xlu0 %v852, 64
  %v855 = vpop.permute.xlu0 %854
  %v857 = vmul.f32 %v839, %v855
  %859 = vrot.lane.b32.xlu0 %v857, 32
  %v860 = vpop.permute.xlu0 %859
  %862 = vrot.lane.b32.xlu0 %v768, 64
  %v863 = vpop.permute.xlu0 %862
  %v865 = vsel %vm144, %v860, %v863
  %v867 = vsel %vm295, %v865, 0
  %869 = vmatpush.msra.mxu0 0.0
  %870 = vmatpush.msra.mxu0 0.0
  %871 = vmatpush.msra.mxu0 0.0
  %872 = vmatpush.msra.mxu0 0.0
  %873 = vmatpush.msra.mxu0 0.0
  %874 = vmatpush.msra.mxu0 0.0
  %875 = vmatpush.msra.mxu0 0.0
  %876 = vmatpush.msra.mxu0 0.0
  %877 = vmatpush.msra.mxu0 %v229
  %878 = vmatpush.msra.mxu0 %v228
  %879 = vmatpush.msra.mxu0 %v227
  %880 = vmatpush.msra.mxu0 %v226
  %881 = vmatpush.msra.mxu0 %v225
  %882 = vmatpush.msra.mxu0 %v224
  %883 = vmatpush.msra.mxu0 %v223
  %884 = vmatpush.msra.mxu0 %v222
  %885 = vmatmul.f32.gmra.mxu0 %v867
  %v886 = vpop.f32.mrf.mxu0
  %v887 = vadd.f32 %v232, %v886
  %888 = vdwg.mxu0
  %v889 = vmul.f32 %v887, 0.5
  %v890 = vtanh.pop %v889
  %v891 = vmul.f32 %v890, 0.5
  %v892 = vadd.f32 %v891, 0.5
  %v893 = vtanh.pop %v887
  %v894 = vmul.f32 %v892, %v762
  %896 = vrot.lane.b32.xlu0 %v893, 64
  %v897 = vpop.permute.xlu0 %896
  %v899 = vmul.f32 %v892, %v897
  %901 = vrot.lane.b32.xlu0 %v899, 32
  %v902 = vpop.permute.xlu0 %901
  %v904 = vadd.f32 %v894, %v902
  %v905 = vtanh.pop %v904
  %907 = vrot.lane.b32.xlu0 %v905, 64
  %v908 = vpop.permute.xlu0 %907
  %v910 = vmul.f32 %v892, %v908
  %912 = vrot.lane.b32.xlu0 %v910, 32
  %v913 = vpop.permute.xlu0 %912
  %v914 = vsel %vm144, %v913, 0
  %916 = vmatpush.msra.mxu0 0.0
  %917 = vmatpush.msra.mxu0 0.0
  %918 = vmatpush.msra.mxu0 0.0
  %919 = vmatpush.msra.mxu0 0.0
  %920 = vmatpush.msra.mxu0 0.0
  %921 = vmatpush.msra.mxu0 0.0
  %922 = vmatpush.msra.mxu0 0.0
  %923 = vmatpush.msra.mxu0 0.0
  %924 = vmatpush.msra.mxu0 0.0
  %925 = vmatpush.msra.mxu0 0.0
  %926 = vmatpush.msra.mxu0 0.0
  %927 = vmatpush.msra.mxu0 0.0
  %928 = vmatpush.msra.mxu0 %v237
  %929 = vmatpush.msra.mxu0 %v236
  %930 = vmatpush.msra.mxu0 %v235
  %931 = vmatpush.msra.mxu0 %v234
  %932 = vmatmul.f32.gmra.mxu0 %v914
  %v933 = vpop.f32.mrf.mxu0
  %v934 = vadd.f32 %v240, %v933
  %935 = vdwg.mxu0
  %v936 = vtanh.pop %v934
  %v937 = vmul.f32 %v936, %v368
  %v938 = vsel %vm371, %v937, 0.0
  %939 = vadd.xlane.f32.xlu0 %v938
  %v940 = vpop.xlane.xlu0 %939
  %v941 = vmax.f32 %v799, %v940
  %v942 = vsub.f32 %v799, %v941
  %v943 = vmul.f32 %v942, 1.442695
  %v944 = vpow.pop %v943
  %v945 = vsub.f32 %v940, %v941
  %v946 = vmul.f32 %v945, 1.442695
  %v947 = vpow.pop %v946
  %v948 = vmul.f32 %v807, %v944
  %v949 = vadd.f32 %v948, %v947
  %v950 = vmul.f32 %v810, %v944
  %v951 = vmul.f32 %v947, %v910
  %v952 = vadd.f32 %v950, %v951
  %s953 = scalar_lea.vmem [#allocation2], 40
  %v954 = vld [vmem:[%s953] sm:$0xff]
  %v955 = vsel %vm144, %v860, 0
  %957 = vmatpush.msra.mxu0 0.0
  %958 = vmatpush.msra.mxu0 0.0
  %959 = vmatpush.msra.mxu0 0.0
  %960 = vmatpush.msra.mxu0 0.0
  %961 = vmatpush.msra.mxu0 0.0
  %962 = vmatpush.msra.mxu0 0.0
  %963 = vmatpush.msra.mxu0 0.0
  %964 = vmatpush.msra.mxu0 0.0
  %965 = vmatpush.msra.mxu0 0.0
  %966 = vmatpush.msra.mxu0 0.0
  %967 = vmatpush.msra.mxu0 0.0
  %968 = vmatpush.msra.mxu0 0.0
  %969 = vmatpush.msra.mxu0 %v221
  %970 = vmatpush.msra.mxu0 %v220
  %971 = vmatpush.msra.mxu0 %v219
  %972 = vmatpush.msra.mxu0 %v218
  %973 = vmatmul.f32.gmra.mxu0 %v955
  %v974 = vpop.f32.mrf.mxu0
  %v975 = vadd.f32 0.0, %v974
  %976 = vdwg.mxu0
  %v977 = vadd.f32 %v954, %v975
  %v978 = vmul.f32 %v977, 0.5
  %v979 = vtanh.pop %v978
  %v980 = vmul.f32 %v979, 0.5
  %v981 = vadd.f32 %v980, 0.5
  %v982 = vtanh.pop %v977
  %v983 = vmul.f32 %v981, %v851
  %985 = vrot.lane.b32.xlu0 %v982, 64
  %v986 = vpop.permute.xlu0 %985
  %v988 = vmul.f32 %v981, %v986
  %990 = vrot.lane.b32.xlu0 %v988, 32
  %v991 = vpop.permute.xlu0 %990
  %v993 = vadd.f32 %v983, %v991
  %v994 = vtanh.pop %v993
  %996 = vrot.lane.b32.xlu0 %v994, 64
  %v997 = vpop.permute.xlu0 %996
  %v999 = vmul.f32 %v981, %v997
  %1001 = vrot.lane.b32.xlu0 %v999, 32
  %v1002 = vpop.permute.xlu0 %1001
  %1004 = vrot.lane.b32.xlu0 %v910, 64
  %v1005 = vpop.permute.xlu0 %1004
  %v1007 = vsel %vm144, %v1002, %v1005
  %v1009 = vsel %vm295, %v1007, 0
  %1011 = vmatpush.msra.mxu0 0.0
  %1012 = vmatpush.msra.mxu0 0.0
  %1013 = vmatpush.msra.mxu0 0.0
  %1014 = vmatpush.msra.mxu0 0.0
  %1015 = vmatpush.msra.mxu0 0.0
  %1016 = vmatpush.msra.mxu0 0.0
  %1017 = vmatpush.msra.mxu0 0.0
  %1018 = vmatpush.msra.mxu0 0.0
  %1019 = vmatpush.msra.mxu0 %v229
  %1020 = vmatpush.msra.mxu0 %v228
  %1021 = vmatpush.msra.mxu0 %v227
  %1022 = vmatpush.msra.mxu0 %v226
  %1023 = vmatpush.msra.mxu0 %v225
  %1024 = vmatpush.msra.mxu0 %v224
  %1025 = vmatpush.msra.mxu0 %v223
  %1026 = vmatpush.msra.mxu0 %v222
  %1027 = vmatmul.f32.gmra.mxu0 %v1009
  %v1028 = vpop.f32.mrf.mxu0
  %v1029 = vadd.f32 %v232, %v1028
  %1030 = vdwg.mxu0
  %v1031 = vmul.f32 %v1029, 0.5
  %v1032 = vtanh.pop %v1031
  %v1033 = vmul.f32 %v1032, 0.5
  %v1034 = vadd.f32 %v1033, 0.5
  %v1035 = vtanh.pop %v1029
  %v1036 = vmul.f32 %v1034, %v904
  %1038 = vrot.lane.b32.xlu0 %v1035, 64
  %v1039 = vpop.permute.xlu0 %1038
  %v1041 = vmul.f32 %v1034, %v1039
  %1043 = vrot.lane.b32.xlu0 %v1041, 32
  %v1044 = vpop.permute.xlu0 %1043
  %v1046 = vadd.f32 %v1036, %v1044
  %v1047 = vtanh.pop %v1046
  %1049 = vrot.lane.b32.xlu0 %v1047, 64
  %v1050 = vpop.permute.xlu0 %1049
  %v1052 = vmul.f32 %v1034, %v1050
  %1054 = vrot.lane.b32.xlu0 %v1052, 32
  %v1055 = vpop.permute.xlu0 %1054
  %v1056 = vsel %vm144, %v1055, 0
  %1058 = vmatpush.msra.mxu0 0.0
  %1059 = vmatpush.msra.mxu0 0.0
  %1060 = vmatpush.msra.mxu0 0.0
  %1061 = vmatpush.msra.mxu0 0.0
  %1062 = vmatpush.msra.mxu0 0.0
  %1063 = vmatpush.msra.mxu0 0.0
  %1064 = vmatpush.msra.mxu0 0.0
  %1065 = vmatpush.msra.mxu0 0.0
  %1066 = vmatpush.msra.mxu0 0.0
  %1067 = vmatpush.msra.mxu0 0.0
  %1068 = vmatpush.msra.mxu0 0.0
  %1069 = vmatpush.msra.mxu0 0.0
  %1070 = vmatpush.msra.mxu0 %v237
  %1071 = vmatpush.msra.mxu0 %v236
  %1072 = vmatpush.msra.mxu0 %v235
  %1073 = vmatpush.msra.mxu0 %v234
  %1074 = vmatmul.f32.gmra.mxu0 %v1056
  %v1075 = vpop.f32.mrf.mxu0
  %v1076 = vadd.f32 %v240, %v1075
  %1077 = vdwg.mxu0
  %v1078 = vtanh.pop %v1076
  %v1079 = vmul.f32 %v1078, %v368
  %v1080 = vsel %vm371, %v1079, 0.0
  %1081 = vadd.xlane.f32.xlu0 %v1080
  %v1082 = vpop.xlane.xlu0 %1081
  %v1083 = vmax.f32 %v941, %v1082
  %v1084 = vsub.f32 %v941, %v1083
  %v1085 = vmul.f32 %v1084, 1.442695
  %v1086 = vpow.pop %v1085
  %v1087 = vsub.f32 %v1082, %v1083
  %v1088 = vmul.f32 %v1087, 1.442695
  %v1089 = vpow.pop %v1088
  %v1090 = vmul.f32 %v949, %v1086
  %v1091 = vadd.f32 %v1090, %v1089
  %v1092 = vmul.f32 %v952, %v1086
  %v1093 = vmul.f32 %v1089, %v1052
  %v1094 = vadd.f32 %v1092, %v1093
  %s1095 = scalar_lea.vmem [#allocation2], 48
  %v1096 = vld [vmem:[%s1095] sm:$0xff]
  %v1097 = vsel %vm144, %v1002, 0
  %1099 = vmatpush.msra.mxu0 0.0
  %1100 = vmatpush.msra.mxu0 0.0
  %1101 = vmatpush.msra.mxu0 0.0
  %1102 = vmatpush.msra.mxu0 0.0
  %1103 = vmatpush.msra.mxu0 0.0
  %1104 = vmatpush.msra.mxu0 0.0
  %1105 = vmatpush.msra.mxu0 0.0
  %1106 = vmatpush.msra.mxu0 0.0
  %1107 = vmatpush.msra.mxu0 0.0
  %1108 = vmatpush.msra.mxu0 0.0
  %1109 = vmatpush.msra.mxu0 0.0
  %1110 = vmatpush.msra.mxu0 0.0
  %1111 = vmatpush.msra.mxu0 %v221
  %1112 = vmatpush.msra.mxu0 %v220
  %1113 = vmatpush.msra.mxu0 %v219
  %1114 = vmatpush.msra.mxu0 %v218
  %1115 = vmatmul.f32.gmra.mxu0 %v1097
  %v1116 = vpop.f32.mrf.mxu0
  %v1117 = vadd.f32 0.0, %v1116
  %1118 = vdwg.mxu0
  %v1119 = vadd.f32 %v1096, %v1117
  %v1120 = vmul.f32 %v1119, 0.5
  %v1121 = vtanh.pop %v1120
  %v1122 = vmul.f32 %v1121, 0.5
  %v1123 = vadd.f32 %v1122, 0.5
  %v1124 = vtanh.pop %v1119
  %v1125 = vmul.f32 %v1123, %v993
  %1127 = vrot.lane.b32.xlu0 %v1124, 64
  %v1128 = vpop.permute.xlu0 %1127
  %v1130 = vmul.f32 %v1123, %v1128
  %1132 = vrot.lane.b32.xlu0 %v1130, 32
  %v1133 = vpop.permute.xlu0 %1132
  %v1135 = vadd.f32 %v1125, %v1133
  %v1136 = vtanh.pop %v1135
  %1138 = vrot.lane.b32.xlu0 %v1136, 64
  %v1139 = vpop.permute.xlu0 %1138
  %v1141 = vmul.f32 %v1123, %v1139
  %1143 = vrot.lane.b32.xlu0 %v1141, 32
  %v1144 = vpop.permute.xlu0 %1143
  %1146 = vrot.lane.b32.xlu0 %v1052, 64
  %v1147 = vpop.permute.xlu0 %1146
  %v1149 = vsel %vm144, %v1144, %v1147
  %v1151 = vsel %vm295, %v1149, 0
  %1153 = vmatpush.msra.mxu0 0.0
  %1154 = vmatpush.msra.mxu0 0.0
  %1155 = vmatpush.msra.mxu0 0.0
  %1156 = vmatpush.msra.mxu0 0.0
  %1157 = vmatpush.msra.mxu0 0.0
  %1158 = vmatpush.msra.mxu0 0.0
  %1159 = vmatpush.msra.mxu0 0.0
  %1160 = vmatpush.msra.mxu0 0.0
  %1161 = vmatpush.msra.mxu0 %v229
  %1162 = vmatpush.msra.mxu0 %v228
  %1163 = vmatpush.msra.mxu0 %v227
  %1164 = vmatpush.msra.mxu0 %v226
  %1165 = vmatpush.msra.mxu0 %v225
  %1166 = vmatpush.msra.mxu0 %v224
  %1167 = vmatpush.msra.mxu0 %v223
  %1168 = vmatpush.msra.mxu0 %v222
  %1169 = vmatmul.f32.gmra.mxu0 %v1151
  %v1170 = vpop.f32.mrf.mxu0
  %v1171 = vadd.f32 %v232, %v1170
  %1172 = vdwg.mxu0
  %v1173 = vmul.f32 %v1171, 0.5
  %v1174 = vtanh.pop %v1173
  %v1175 = vmul.f32 %v1174, 0.5
  %v1176 = vadd.f32 %v1175, 0.5
  %v1177 = vtanh.pop %v1171
  %v1178 = vmul.f32 %v1176, %v1046
  %1180 = vrot.lane.b32.xlu0 %v1177, 64
  %v1181 = vpop.permute.xlu0 %1180
  %v1183 = vmul.f32 %v1176, %v1181
  %1185 = vrot.lane.b32.xlu0 %v1183, 32
  %v1186 = vpop.permute.xlu0 %1185
  %v1188 = vadd.f32 %v1178, %v1186
  %v1189 = vtanh.pop %v1188
  %1191 = vrot.lane.b32.xlu0 %v1189, 64
  %v1192 = vpop.permute.xlu0 %1191
  %v1194 = vmul.f32 %v1176, %v1192
  %1196 = vrot.lane.b32.xlu0 %v1194, 32
  %v1197 = vpop.permute.xlu0 %1196
  %v1198 = vsel %vm144, %v1197, 0
  %1200 = vmatpush.msra.mxu0 0.0
  %1201 = vmatpush.msra.mxu0 0.0
  %1202 = vmatpush.msra.mxu0 0.0
  %1203 = vmatpush.msra.mxu0 0.0
  %1204 = vmatpush.msra.mxu0 0.0
  %1205 = vmatpush.msra.mxu0 0.0
  %1206 = vmatpush.msra.mxu0 0.0
  %1207 = vmatpush.msra.mxu0 0.0
  %1208 = vmatpush.msra.mxu0 0.0
  %1209 = vmatpush.msra.mxu0 0.0
  %1210 = vmatpush.msra.mxu0 0.0
  %1211 = vmatpush.msra.mxu0 0.0
  %1212 = vmatpush.msra.mxu0 %v237
  %1213 = vmatpush.msra.mxu0 %v236
  %1214 = vmatpush.msra.mxu0 %v235
  %1215 = vmatpush.msra.mxu0 %v234
  %1216 = vmatmul.f32.gmra.mxu0 %v1198
  %v1217 = vpop.f32.mrf.mxu0
  %v1218 = vadd.f32 %v240, %v1217
  %1219 = vdwg.mxu0
  %v1220 = vtanh.pop %v1218
  %v1221 = vmul.f32 %v1220, %v368
  %v1222 = vsel %vm371, %v1221, 0.0
  %1223 = vadd.xlane.f32.xlu0 %v1222
  %v1224 = vpop.xlane.xlu0 %1223
  %v1225 = vmax.f32 %v1083, %v1224
  %v1226 = vsub.f32 %v1083, %v1225
  %v1227 = vmul.f32 %v1226, 1.442695
  %v1228 = vpow.pop %v1227
  %v1229 = vsub.f32 %v1224, %v1225
  %v1230 = vmul.f32 %v1229, 1.442695
  %v1231 = vpow.pop %v1230
  %v1232 = vmul.f32 %v1091, %v1228
  %v1233 = vadd.f32 %v1232, %v1231
  %v1234 = vmul.f32 %v1094, %v1228
  %v1235 = vmul.f32 %v1231, %v1194
  %v1236 = vadd.f32 %v1234, %v1235
  %s1237 = scalar_lea.vmem [#allocation2], 56
  %v1238 = vld [vmem:[%s1237] sm:$0xff]
  %v1239 = vsel %vm144, %v1144, 0
  %1241 = vmatpush.msra.mxu0 0.0
  %1242 = vmatpush.msra.mxu0 0.0
  %1243 = vmatpush.msra.mxu0 0.0
  %1244 = vmatpush.msra.mxu0 0.0
  %1245 = vmatpush.msra.mxu0 0.0
  %1246 = vmatpush.msra.mxu0 0.0
  %1247 = vmatpush.msra.mxu0 0.0
  %1248 = vmatpush.msra.mxu0 0.0
  %1249 = vmatpush.msra.mxu0 0.0
  %1250 = vmatpush.msra.mxu0 0.0
  %1251 = vmatpush.msra.mxu0 0.0
  %1252 = vmatpush.msra.mxu0 0.0
  %1253 = vmatpush.msra.mxu0 %v221
  %1254 = vmatpush.msra.mxu0 %v220
  %1255 = vmatpush.msra.mxu0 %v219
  %1256 = vmatpush.msra.mxu0 %v218
  %1257 = vmatmul.f32.gmra.mxu0 %v1239
  %v1258 = vpop.f32.mrf.mxu0
  %v1259 = vadd.f32 0.0, %v1258
  %1260 = vdwg.mxu0
  %v1261 = vadd.f32 %v1238, %v1259
  %v1262 = vmul.f32 %v1261, 0.5
  %v1263 = vtanh.pop %v1262
  %v1264 = vmul.f32 %v1263, 0.5
  %v1265 = vadd.f32 %v1264, 0.5
  %v1266 = vtanh.pop %v1261
  %v1267 = vmul.f32 %v1265, %v1135
  %1269 = vrot.lane.b32.xlu0 %v1266, 64
  %v1270 = vpop.permute.xlu0 %1269
  %v1272 = vmul.f32 %v1265, %v1270
  %1274 = vrot.lane.b32.xlu0 %v1272, 32
  %v1275 = vpop.permute.xlu0 %1274
  %v1277 = vadd.f32 %v1267, %v1275
  %v1278 = vtanh.pop %v1277
  %1280 = vrot.lane.b32.xlu0 %v1278, 64
  %v1281 = vpop.permute.xlu0 %1280
  %v1283 = vmul.f32 %v1265, %v1281
  %1285 = vrot.lane.b32.xlu0 %v1283, 32
  %v1286 = vpop.permute.xlu0 %1285
  %1288 = vrot.lane.b32.xlu0 %v1194, 64
  %v1289 = vpop.permute.xlu0 %1288
  %v1291 = vsel %vm144, %v1286, %v1289
  %v1293 = vsel %vm295, %v1291, 0
  %1295 = vmatpush.msra.mxu0 0.0
  %1296 = vmatpush.msra.mxu0 0.0
  %1297 = vmatpush.msra.mxu0 0.0
  %1298 = vmatpush.msra.mxu0 0.0
  %1299 = vmatpush.msra.mxu0 0.0
  %1300 = vmatpush.msra.mxu0 0.0
  %1301 = vmatpush.msra.mxu0 0.0
  %1302 = vmatpush.msra.mxu0 0.0
  %1303 = vmatpush.msra.mxu0 %v229
  %1304 = vmatpush.msra.mxu0 %v228
  %1305 = vmatpush.msra.mxu0 %v227
  %1306 = vmatpush.msra.mxu0 %v226
  %1307 = vmatpush.msra.mxu0 %v225
  %1308 = vmatpush.msra.mxu0 %v224
  %1309 = vmatpush.msra.mxu0 %v223
  %1310 = vmatpush.msra.mxu0 %v222
  %1311 = vmatmul.f32.gmra.mxu0 %v1293
  %v1312 = vpop.f32.mrf.mxu0
  %v1313 = vadd.f32 %v232, %v1312
  %1314 = vdwg.mxu0
  %v1315 = vmul.f32 %v1313, 0.5
  %v1316 = vtanh.pop %v1315
  %v1317 = vmul.f32 %v1316, 0.5
  %v1318 = vadd.f32 %v1317, 0.5
  %v1319 = vtanh.pop %v1313
  %v1320 = vmul.f32 %v1318, %v1188
  %1322 = vrot.lane.b32.xlu0 %v1319, 64
  %v1323 = vpop.permute.xlu0 %1322
  %v1325 = vmul.f32 %v1318, %v1323
  %1327 = vrot.lane.b32.xlu0 %v1325, 32
  %v1328 = vpop.permute.xlu0 %1327
  %v1330 = vadd.f32 %v1320, %v1328
  %v1331 = vtanh.pop %v1330
  %1333 = vrot.lane.b32.xlu0 %v1331, 64
  %v1334 = vpop.permute.xlu0 %1333
  %v1336 = vmul.f32 %v1318, %v1334
  %1338 = vrot.lane.b32.xlu0 %v1336, 32
  %v1339 = vpop.permute.xlu0 %1338
  %v1340 = vsel %vm144, %v1339, 0
  %1342 = vmatpush.msra.mxu0 0.0
  %1343 = vmatpush.msra.mxu0 0.0
  %1344 = vmatpush.msra.mxu0 0.0
  %1345 = vmatpush.msra.mxu0 0.0
  %1346 = vmatpush.msra.mxu0 0.0
  %1347 = vmatpush.msra.mxu0 0.0
  %1348 = vmatpush.msra.mxu0 0.0
  %1349 = vmatpush.msra.mxu0 0.0
  %1350 = vmatpush.msra.mxu0 0.0
  %1351 = vmatpush.msra.mxu0 0.0
  %1352 = vmatpush.msra.mxu0 0.0
  %1353 = vmatpush.msra.mxu0 0.0
  %1354 = vmatpush.msra.mxu0 %v237
  %1355 = vmatpush.msra.mxu0 %v236
  %1356 = vmatpush.msra.mxu0 %v235
  %1357 = vmatpush.msra.mxu0 %v234
  %1358 = vmatmul.f32.gmra.mxu0 %v1340
  %v1359 = vpop.f32.mrf.mxu0
  %v1360 = vadd.f32 %v240, %v1359
  %1361 = vdwg.mxu0
  %v1362 = vtanh.pop %v1360
  %v1363 = vmul.f32 %v1362, %v368
  %v1364 = vsel %vm371, %v1363, 0.0
  %1365 = vadd.xlane.f32.xlu0 %v1364
  %v1366 = vpop.xlane.xlu0 %1365
  %v1367 = vmax.f32 %v1225, %v1366
  %v1368 = vsub.f32 %v1225, %v1367
  %v1369 = vmul.f32 %v1368, 1.442695
  %v1370 = vpow.pop %v1369
  %v1371 = vsub.f32 %v1366, %v1367
  %v1372 = vmul.f32 %v1371, 1.442695
  %v1373 = vpow.pop %v1372
  %v1374 = vmul.f32 %v1233, %v1370
  %v1375 = vadd.f32 %v1374, %v1373
  %v1376 = vmul.f32 %v1236, %v1370
  %v1377 = vmul.f32 %v1373, %v1336
  %v1378 = vadd.f32 %v1376, %v1377
  %v1379 = vrcp.pop %v1375
  %v1380 = vmul.f32 %v1375, %v1379
  %v1381 = vsub.f32 2.0, %v1380
  %v1382 = vmul.f32 %v1379, %v1381
  %v1383 = vmul.f32 %v1378, %v1382
  %1386 = vrot.lane.b32.xlu0 %v1383, 64
  %v1387 = vpop.permute.xlu0 %1386
  %v1389 = vsel %vm144, %v1339, %v1387
  %v1390 = vld [vmem:[%s11] sm:$0xff]
  %v1391 = vld [vmem:[%s11 + $0x8] sm:$0xff]
  %v1392 = vld [vmem:[%s11 + $0x10] sm:$0xff]
  %v1393 = vld [vmem:[%s11 + $0x18] sm:$0xff]
  %v1394 = vld [vmem:[%s11 + $0x20] sm:$0xff]
  %v1395 = vld [vmem:[%s11 + $0x28] sm:$0xff]
  %v1396 = vld [vmem:[%s11 + $0x30] sm:$0xff]
  %v1397 = vld [vmem:[%s11 + $0x38] sm:$0xff]
  %v1398 = vld [vmem:[%s12] sm:$0x1]
  %v1400 = vperm.slane %v1398, 0
  %v1403 = vsel %vm295, %v1389, 0
  %1405 = vmatpush.msra.mxu0 0.0
  %1406 = vmatpush.msra.mxu0 0.0
  %1407 = vmatpush.msra.mxu0 0.0
  %1408 = vmatpush.msra.mxu0 0.0
  %1409 = vmatpush.msra.mxu0 0.0
  %1410 = vmatpush.msra.mxu0 0.0
  %1411 = vmatpush.msra.mxu0 0.0
  %1412 = vmatpush.msra.mxu0 0.0
  %1413 = vmatpush.msra.mxu0 %v1397
  %1414 = vmatpush.msra.mxu0 %v1396
  %1415 = vmatpush.msra.mxu0 %v1395
  %1416 = vmatpush.msra.mxu0 %v1394
  %1417 = vmatpush.msra.mxu0 %v1393
  %1418 = vmatpush.msra.mxu0 %v1392
  %1419 = vmatpush.msra.mxu0 %v1391
  %1420 = vmatpush.msra.mxu0 %v1390
  %1421 = vmatmul.f32.gmra.mxu0 %v1403
  %v1422 = vpop.f32.mrf.mxu0
  %v1423 = vadd.f32 %v1400, %v1422
  %1424 = vdwg.mxu0
  %vm1425 = vcmask 23552
  %1426 = vst.msk [vmem:[%s13] sm:$0xff] %vm1425, %v1423
  // Predicated region
  $region54: #{tpu_custom_call.1} parent=0 // pred_check
    _
  $region55: #{tpu_custom_call.1} parent=0 // pred_check_branch
    %1428 = sbr.rel (0) target = $region57
  $region56: #{tpu_custom_call.1} parent=0 // pred_region
    _
  $region57: #{tpu_custom_call.1} parent=0 // pred_fallthru
    _
  // Predicated region
  $region58: #{tpu_custom_call.1} parent=0 // pred_check
    _
  $region59: #{tpu_custom_call.1} parent=0 // pred_check_branch
    %1430 = sbr.rel (0) target = $region61
  $region60: #{tpu_custom_call.1} parent=0 // pred_region
    _
  $region61: #{tpu_custom_call.1} parent=0 // pred_fallthru
    _

</llo_original>
